<compile_context>
chip_gen: v7x
topology: tpu7x:2x2x1
jax: 0.10.0
libtpu: 0.0.40
codegen_flags: <defaults>
</compile_context>

<pallas_src>
import math
import jax
import jax.numpy as jnp
from jax.experimental import pallas as pl
from jax.experimental.pallas import tpu as pltpu

# ---------------- small, TPU-friendly config ----------------
B = 2                 # batch
S = 16                # seq_len
D_IN = 128            # input_size
ATTN_HIDDEN = 128     # attn_config.hidden_size (== attention output size)
NUM_HEADS = 4
NUM_KV_HEADS = 2      # GQA: num_heads % num_kv_heads == 0
HEAD_DIM = ATTN_HIDDEN // NUM_HEADS          # 32
NUM_REPEAT = NUM_HEADS // NUM_KV_HEADS       # repeat_interleave factor
KV_HIDDEN = NUM_KV_HEADS * HEAD_DIM          # 64
QKV_WIDTH = ATTN_HIDDEN + 2 * KV_HIDDEN      # 256 (packed q|k|v projection)
GROUP_WIDTH = (NUM_REPEAT + 2) * HEAD_DIM    # 128-lane band per KV group: [q_h0|q_h1|k|v]
K_IN_BAND = NUM_REPEAT * HEAD_DIM            # 64  (k offset inside a group band)
V_IN_BAND = (NUM_REPEAT + 1) * HEAD_DIM      # 96  (v offset inside a group band)
FFN_HIDDEN = 256      # ffn_config.hidden_size
D_OUT = 128           # output_size (== ATTN_HIDDEN so both residuals are valid)
EPS = 1e-6            # norm_eps
# use_conditional_norm=False, atten_dropout=0.0, positional_embedding='absolute'
# => condition / relative_positions / rope are unused.


def _make_kernel(bs_batch, seq):
    """Kernel factory: unroll bounds come from the actual input shape, not module constants."""
    scale = 1.0 / math.sqrt(HEAD_DIM)

    def kernel(x_ref, wqkv_ref, wo_ref, w13_hbm, w2_hbm, ffn_nw_ref, out_ref,
               w13_buf, w2_buf, ctx_buf, dma_sem):
        # ---- kick off the FFN weight DMAs immediately; wait only right before the FFN ----
        w13_cp = pltpu.make_async_copy(w13_hbm, w13_buf, dma_sem.at[0])
        w2_cp = pltpu.make_async_copy(w2_hbm, w2_buf, dma_sem.at[1])
        w13_cp.start()
        w2_cp.start()

        x = x_ref[...]                       # (BS, D_IN) f32
        ffn_nw = ffn_nw_ref[...]             # (1, ATTN_HIDDEN) f32

        # ---------------- attention branch ----------------
        # attn RMSNorm: its weight is already folded into the QKV projection rows.
        h = x * jax.lax.rsqrt(jnp.mean(x * x, axis=-1, keepdims=True) + EPS)

        # fused, group-band-packed QKV projection: one (BS,128)@(128,256) bf16 matmul
        qkv = jnp.dot(h.astype(jnp.bfloat16), wqkv_ref[...],
                      preferred_element_type=jnp.float32)            # (BS, 256) f32

        for b in range(bs_batch):            # static unroll over batch
            r0 = b * seq
            for g in range(NUM_KV_HEADS):    # static unroll over KV groups
                band = g * GROUP_WIDTH
                kg = qkv[r0:r0 + seq, band + K_IN_BAND:band + K_IN_BAND + HEAD_DIM]  # (S, HD)
                vg = qkv[r0:r0 + seq, band + V_IN_BAND:band + V_IN_BAND + HEAD_DIM]  # (S, HD)
                # row-stack the NUM_REPEAT query heads sharing this KV head
                qg = jnp.concatenate(
                    [qkv[r0:r0 + seq, band + r * HEAD_DIM:band + (r + 1) * HEAD_DIM]
                     for r in range(NUM_REPEAT)], axis=0)                            # (R*S, HD)
                # scores: contract on the shared feature axis (no explicit kg.T)
                sc = jax.lax.dot_general(
                    qg, kg, dimension_numbers=(((1,), (1,)), ((), ())),
                    preferred_element_type=jnp.float32) * scale                      # (R*S, S)
                sc = sc - jnp.max(sc, axis=-1, keepdims=True)
                p = jnp.exp(sc)
                p = p / jnp.sum(p, axis=-1, keepdims=True)           # exact divide (f32)
                ctx_g = jnp.dot(p, vg, preferred_element_type=jnp.float32)           # (R*S, HD)
                # deposit each head's context into its 32-lane band of the scratch buffer
                for r in range(NUM_REPEAT):
                    hd = g * NUM_REPEAT + r
                    ctx_buf[r0:r0 + seq, hd * HEAD_DIM:(hd + 1) * HEAD_DIM] = \
                        ctx_g[r * seq:(r + 1) * seq, :]

        # single full-K o-projection: (BS,128)@(128,128) bf16 matmul
        attn_out = jnp.dot(ctx_buf[...].astype(jnp.bfloat16), wo_ref[...],
                           preferred_element_type=jnp.float32)                       # (BS, D_OUT)
        h1 = x + attn_out                                            # residual #1

        # ---------------- FFN branch (SwiGLU) ----------------
        # ffn RMSNorm weight kept un-folded: the second residual uses the NORMED tensor.
        h2 = (h1 * jax.lax.rsqrt(jnp.mean(h1 * h1, axis=-1, keepdims=True) + EPS)) * ffn_nw

        # FFN weights have been streaming in during attention compute.
        w13_cp.wait()
        w2_cp.wait()

        h2b = h2.astype(jnp.bfloat16)
        a13 = jnp.dot(h2b, w13_buf[...], preferred_element_type=jnp.float32)         # (BS, 2*FFN)
        a = a13[:, :FFN_HIDDEN]
        gate = a13[:, FFN_HIDDEN:]
        act = a * jax.nn.sigmoid(a) * gate                           # SiLU(a) * gate, f32
        ffn_out = jnp.dot(act.astype(jnp.bfloat16), w2_buf[...],
                          preferred_element_type=jnp.float32)                        # (BS, D_OUT)

        # PyTorch: out = ffn_norm(h1) + ffn(ffn_norm(h1))  -- residual over the normed tensor.
        out_ref[...] = h2 + ffn_out

    return kernel


def prepare_params(p):
    """One-time parameter preparation (hoisted out of the per-call path):
       - fold the attention RMSNorm weight into the QKV projection rows (diag(w) @ W),
       - pack q|k|v per KV group into contiguous 128-lane bands [q_h0|q_h1|k|v],
       - pack w1|w3, cast every matmul weight to bf16."""
    nw = p["attn_nw"].reshape(D_IN, 1)
    wq = p["wq"] * nw
    wk = p["wk"] * nw
    wv = p["wv"] * nw
    cols = []
    for g in range(NUM_KV_HEADS):
        for r in range(NUM_REPEAT):
            h = g * NUM_REPEAT + r
            cols.append(wq[:, h * HEAD_DIM:(h + 1) * HEAD_DIM])
        cols.append(wk[:, g * HEAD_DIM:(g + 1) * HEAD_DIM])
        cols.append(wv[:, g * HEAD_DIM:(g + 1) * HEAD_DIM])
    return {
        "wqkv": jnp.concatenate(cols, axis=1).astype(jnp.bfloat16),          # (D_IN, 256)
        "wo": p["wo"].astype(jnp.bfloat16),                                  # (128, 128)
        "w13": jnp.concatenate([p["w1"], p["w3"]], axis=1).astype(jnp.bfloat16),  # (128, 512)
        "w2": p["w2"].astype(jnp.bfloat16),                                  # (256, 128)
        "ffn_nw": p["ffn_nw"].astype(jnp.float32),                           # (1, 128) f32
    }


def transformer_block(x, prep):
    """x: (B, S, D_IN) float32.  prep: output of prepare_params (bf16 packed weights)."""
    b_, s_, d_ = x.shape
    assert d_ == D_IN and (b_ * s_) % 8 == 0, "shape must match the kernel config"
    bs = b_ * s_
    x2 = x.reshape(bs, D_IN)                 # fold batch into the matmul M dimension

    full = lambda shape: pl.BlockSpec(shape, lambda i: (0, 0))
    cost = pl.CostEstimate(flops=10_000_000, transcendentals=10_500, bytes_accessed=330_000)

    out2 = pl.pallas_call(
        _make_kernel(b_, s_),
        out_shape=jax.ShapeDtypeStruct((bs, D_OUT), jnp.float32),
        grid_spec=pltpu.PrefetchScalarGridSpec(
            num_scalar_prefetch=0,
            grid=(1,),                                   # single step: whole block fused
            in_specs=[
                full((bs, D_IN)),                        # x (batch-folded, f32)
                full((D_IN, QKV_WIDTH)),                 # packed group-banded qkv (bf16)
                full((ATTN_HIDDEN, D_OUT)),              # wo (bf16)
                pl.BlockSpec(memory_space=pl.ANY),       # packed w1|w3 — manual DMA
                pl.BlockSpec(memory_space=pl.ANY),       # w2          — manual DMA
                full((1, ATTN_HIDDEN)),                  # ffn RMSNorm weight (f32)
            ],
            out_specs=full((bs, D_OUT)),
            scratch_shapes=[
                pltpu.VMEM((ATTN_HIDDEN, 2 * FFN_HIDDEN), jnp.bfloat16),   # w13 landing buffer
                pltpu.VMEM((FFN_HIDDEN, D_OUT), jnp.bfloat16),             # w2 landing buffer
                pltpu.VMEM((bs, ATTN_HIDDEN), jnp.float32),                # per-head ctx deposit
                pltpu.SemaphoreType.DMA((2,)),
            ],
        ),
        compiler_params=pltpu.CompilerParams(dimension_semantics=("arbitrary",)),
        cost_estimate=cost,
    )(x2, prep["wqkv"], prep["wo"], prep["w13"], prep["w2"], prep["ffn_nw"])
    return out2.reshape(b_, s_, D_OUT)


# ---------------- pure-JAX reference (mirrors the PyTorch forward, f32) ----------------
def reference(x, p):
    def rms(v, w):
        ms = jnp.mean(v * v, axis=-1, keepdims=True)
        return v * jax.lax.rsqrt(ms + EPS) * w[0]

    h = rms(x, p["attn_nw"])
    q = h @ p["wq"]
    k = h @ p["wk"]
    v = h @ p["wv"]
    q = q.reshape(B, S, NUM_HEADS, HEAD_DIM).transpose(0, 2, 1, 3)
    k = k.reshape(B, S, NUM_KV_HEADS, HEAD_DIM).transpose(0, 2, 1, 3)
    v = v.reshape(B, S, NUM_KV_HEADS, HEAD_DIM).transpose(0, 2, 1, 3)
    k = jnp.repeat(k, NUM_REPEAT, axis=1)
    v = jnp.repeat(v, NUM_REPEAT, axis=1)
    s = jnp.einsum("bhqd,bhkd->bhqk", q, k) / math.sqrt(HEAD_DIM)
    pattn = jax.nn.softmax(s, axis=-1)
    o = jnp.einsum("bhqk,bhkd->bhqd", pattn, v)
    o = o.transpose(0, 2, 1, 3).reshape(B, S, ATTN_HIDDEN)
    h1 = x + o @ p["wo"]
    h2 = rms(h1, p["ffn_nw"])                         # ffn_norm(h1)
    a = h2 @ p["w1"]
    ffn = (a * jax.nn.sigmoid(a) * (h2 @ p["w3"])) @ p["w2"]
    return h2 + ffn                                   # residual over the NORMED tensor (PyTorch)


if __name__ == "__main__":
    key = jax.random.PRNGKey(0)
    keys = jax.random.split(key, 9)
    scale = 0.05
    params = {
        # stored transposed vs. torch nn.Linear ((out,in)) so the kernel does h @ W
        "wq": scale * jax.random.normal(keys[0], (D_IN, ATTN_HIDDEN), jnp.float32),
        "wk": scale * jax.random.normal(keys[1], (D_IN, KV_HIDDEN), jnp.float32),
        "wv": scale * jax.random.normal(keys[2], (D_IN, KV_HIDDEN), jnp.float32),
        "wo": scale * jax.random.normal(keys[3], (ATTN_HIDDEN, ATTN_HIDDEN), jnp.float32),
        "w1": scale * jax.random.normal(keys[4], (ATTN_HIDDEN, FFN_HIDDEN), jnp.float32),
        "w2": scale * jax.random.normal(keys[5], (FFN_HIDDEN, D_OUT), jnp.float32),
        "w3": scale * jax.random.normal(keys[6], (ATTN_HIDDEN, FFN_HIDDEN), jnp.float32),
        "attn_nw": jnp.ones((1, D_IN), jnp.float32),   # RMSNorm weights init to ones
        "ffn_nw": jnp.ones((1, ATTN_HIDDEN), jnp.float32),
    }
    x = jax.random.normal(keys[7], (B, S, D_IN), jnp.float32)

    prep = jax.tree_util.tree_map(jax.block_until_ready, prepare_params(params))  # one-time prep
    out = jax.block_until_ready(transformer_block(x, prep))
    ref = jax.block_until_ready(reference(x, params))

    assert out.shape == (B, S, D_OUT)
    # Softmax divide is exact now; the remaining error is bf16 quantization of the
    # projection / FFN matmul operands (~1e-3 relative). Norms, softmax, SiLU, residuals
    # and all accumulations are f32.
    assert jnp.allclose(out, ref, rtol=2e-2, atol=2e-2), float(jnp.max(jnp.abs(out - ref)))
    print("KERNEL_OK")
</pallas_src>

<mosaic_0001>
module attributes {stable_mosaic.version = 11 : i64} {
  func.func @kernel(%arg0: i32, %arg1: memref<32x128xf32, #tpu.memory_space<vmem>>, %arg2: memref<128x256xbf16, #tpu.memory_space<vmem>>, %arg3: memref<128x128xbf16, #tpu.memory_space<vmem>>, %arg4: memref<128x512xbf16, #tpu.memory_space<any>>, %arg5: memref<256x128xbf16, #tpu.memory_space<any>>, %arg6: memref<1x128xf32, #tpu.memory_space<vmem>>, %arg7: memref<32x128xf32, #tpu.memory_space<vmem>>, %arg8: memref<128x512xbf16, #tpu.memory_space<vmem>>, %arg9: memref<256x128xbf16, #tpu.memory_space<vmem>>, %arg10: memref<32x128xf32, #tpu.memory_space<vmem>>, %arg11: memref<2x!tpu.dma_semaphore, #tpu.memory_space<semaphore_mem>>) attributes {dimension_semantics = [#tpu.dimension_semantics<arbitrary>], iteration_bounds = array<i64: 1>, scalar_prefetch = 0 : i64, scratch_operands = 4 : i64, tpu.core_type = #tpu.core_type<tc>, window_params = [{pipeline_mode = #tpu.pipeline_mode<synchronous>, transform_indices = @transform_0, window_bounds = array<i64: 32, 128>}, {pipeline_mode = #tpu.pipeline_mode<synchronous>, transform_indices = @transform_1, window_bounds = array<i64: 128, 256>}, {pipeline_mode = #tpu.pipeline_mode<synchronous>, transform_indices = @transform_2, window_bounds = array<i64: 128, 128>}, {}, {}, {pipeline_mode = #tpu.pipeline_mode<synchronous>, transform_indices = @transform_5, window_bounds = array<i64: 1, 128>}, {pipeline_mode = #tpu.pipeline_mode<synchronous>, transform_indices = @transform_6, window_bounds = array<i64: 32, 128>}]} {
    %c0_i32 = arith.constant 0 : i32
    %0 = tpu.memref_slice %arg11[%c0_i32] : memref<2x!tpu.dma_semaphore, #tpu.memory_space<semaphore_mem>> -> memref<1x!tpu.dma_semaphore, #tpu.memory_space<semaphore_mem>>
    %1 = tpu.memref_squeeze %0 : memref<1x!tpu.dma_semaphore, #tpu.memory_space<semaphore_mem>> -> memref<!tpu.dma_semaphore, #tpu.memory_space<semaphore_mem>>
    tpu.enqueue_dma source(%arg4 : memref<128x512xbf16, #tpu.memory_space<any>>) target(%arg8 : memref<128x512xbf16, #tpu.memory_space<vmem>>) target_semaphore(%1 : memref<!tpu.dma_semaphore, #tpu.memory_space<semaphore_mem>>)
    %c1_i32 = arith.constant 1 : i32
    %2 = tpu.memref_slice %arg11[%c1_i32] : memref<2x!tpu.dma_semaphore, #tpu.memory_space<semaphore_mem>> -> memref<1x!tpu.dma_semaphore, #tpu.memory_space<semaphore_mem>>
    %3 = tpu.memref_squeeze %2 : memref<1x!tpu.dma_semaphore, #tpu.memory_space<semaphore_mem>> -> memref<!tpu.dma_semaphore, #tpu.memory_space<semaphore_mem>>
    tpu.enqueue_dma source(%arg5 : memref<256x128xbf16, #tpu.memory_space<any>>) target(%arg9 : memref<256x128xbf16, #tpu.memory_space<vmem>>) target_semaphore(%3 : memref<!tpu.dma_semaphore, #tpu.memory_space<semaphore_mem>>)
    %c0 = arith.constant 0 : index
    %c0_0 = arith.constant 0 : index
    %4 = vector.load %arg1[%c0, %c0_0] : memref<32x128xf32, #tpu.memory_space<vmem>>, vector<32x128xf32>
    %c0_1 = arith.constant 0 : index
    %c0_2 = arith.constant 0 : index
    %5 = vector.load %arg6[%c0_1, %c0_2] : memref<1x128xf32, #tpu.memory_space<vmem>>, vector<1x128xf32>
    %6 = arith.mulf %4, %4 : vector<32x128xf32>
    %cst = arith.constant dense<0.000000e+00> : vector<32xf32>
    %7 = vector.multi_reduction <add>, %6, %cst [1] : vector<32x128xf32> to vector<32xf32>
    %8 = vector.shape_cast %7 : vector<32xf32> to vector<32x1xf32>
    %cst_3 = arith.constant 1.280000e+02 : f32
    %9 = vector.broadcast %cst_3 : f32 to vector<32x1xf32>
    %10 = arith.divf %8, %9 : vector<32x1xf32>
    %cst_4 = arith.constant 9.99999997E-7 : f32
    %11 = vector.broadcast %cst_4 : f32 to vector<32x1xf32>
    %12 = arith.addf %10, %11 : vector<32x1xf32>
    %13 = math.rsqrt %12 : vector<32x1xf32>
    %14 = vector.broadcast %13 : vector<32x1xf32> to vector<32x128xf32>
    %15 = arith.mulf %4, %14 : vector<32x128xf32>
    %16 = arith.truncf %15 : vector<32x128xf32> to vector<32x128xbf16>
    %c0_5 = arith.constant 0 : index
    %c0_6 = arith.constant 0 : index
    %17 = vector.load %arg2[%c0_5, %c0_6] : memref<128x256xbf16, #tpu.memory_space<vmem>>, vector<128x256xbf16>
    %cst_7 = arith.constant dense<0.000000e+00> : vector<32x256xf32>
    %18 = tpu.matmul %16, %17, %cst_7 {dimension_numbers = #tpu.dot_dimension_numbers<[1], [0], [0], [1], [0, 0, 1, 1], [], []>} : vector<32x128xbf16>, vector<128x256xbf16>, vector<32x256xf32> -> vector<32x256xf32>
    %19 = vector.extract_strided_slice %18 {offsets = [0, 64], sizes = [16, 32], strides = [1, 1]} : vector<32x256xf32> to vector<16x32xf32>
    %20 = vector.extract_strided_slice %18 {offsets = [0, 96], sizes = [16, 32], strides = [1, 1]} : vector<32x256xf32> to vector<16x32xf32>
    %21 = vector.extract_strided_slice %18 {offsets = [0, 0], sizes = [16, 32], strides = [1, 1]} : vector<32x256xf32> to vector<16x32xf32>
    %22 = vector.extract_strided_slice %18 {offsets = [0, 32], sizes = [16, 32], strides = [1, 1]} : vector<32x256xf32> to vector<16x32xf32>
    %23 = tpu.concatenate %21, %22 in 0 : vector<16x32xf32>, vector<16x32xf32> -> vector<32x32xf32>
    %cst_8 = arith.constant dense<0.000000e+00> : vector<32x16xf32>
    %24 = tpu.matmul %23, %19, %cst_8 {dimension_numbers = #tpu.dot_dimension_numbers<[1], [1], [0], [0], [0, 0, 1, 0], [], []>} : vector<32x32xf32>, vector<16x32xf32>, vector<32x16xf32> -> vector<32x16xf32>
    %cst_9 = arith.constant 0.176776692 : f32
    %25 = vector.broadcast %cst_9 : f32 to vector<32x16xf32>
    %26 = arith.mulf %24, %25 : vector<32x16xf32>
    %cst_10 = arith.constant dense<0xFF800000> : vector<32xf32>
    %27 = vector.multi_reduction <maximumf>, %26, %cst_10 [1] : vector<32x16xf32> to vector<32xf32>
    %28 = vector.shape_cast %27 : vector<32xf32> to vector<32x1xf32>
    %29 = vector.broadcast %28 : vector<32x1xf32> to vector<32x16xf32>
    %30 = arith.subf %26, %29 : vector<32x16xf32>
    %31 = math.exp %30 : vector<32x16xf32>
    %cst_11 = arith.constant dense<0.000000e+00> : vector<32xf32>
    %32 = vector.multi_reduction <add>, %31, %cst_11 [1] : vector<32x16xf32> to vector<32xf32>
    %33 = vector.shape_cast %32 : vector<32xf32> to vector<32x1xf32>
    %34 = vector.broadcast %33 : vector<32x1xf32> to vector<32x16xf32>
    %35 = arith.divf %31, %34 : vector<32x16xf32>
    %cst_12 = arith.constant dense<0.000000e+00> : vector<32x32xf32>
    %36 = tpu.matmul %35, %20, %cst_12 {dimension_numbers = #tpu.dot_dimension_numbers<[1], [0], [0], [1], [0, 0, 1, 1], [], []>} : vector<32x16xf32>, vector<16x32xf32>, vector<32x32xf32> -> vector<32x32xf32>
    %37 = vector.extract_strided_slice %36 {offsets = [0, 0], sizes = [16, 32], strides = [1, 1]} : vector<32x32xf32> to vector<16x32xf32>
    %c0_13 = arith.constant 0 : index
    %c0_14 = arith.constant 0 : index
    %38 = vector.load %arg10[%c0_13, %c0_14] : memref<32x128xf32, #tpu.memory_space<vmem>>, vector<16x32xf32>
    tpu.vector_store %arg10[%c0_13, %c0_14], %37 {strides = array<i32>} : memref<32x128xf32, #tpu.memory_space<vmem>>, vector<16x32xf32>,
    %39 = vector.extract_strided_slice %36 {offsets = [16, 0], sizes = [16, 32], strides = [1, 1]} : vector<32x32xf32> to vector<16x32xf32>
    %c0_15 = arith.constant 0 : index
    %c32 = arith.constant 32 : index
    %40 = vector.load %arg10[%c0_15, %c32] : memref<32x128xf32, #tpu.memory_space<vmem>>, vector<16x32xf32>
    tpu.vector_store %arg10[%c0_15, %c32], %39 {strides = array<i32>} : memref<32x128xf32, #tpu.memory_space<vmem>>, vector<16x32xf32>,
    %41 = vector.extract_strided_slice %18 {offsets = [0, 192], sizes = [16, 32], strides = [1, 1]} : vector<32x256xf32> to vector<16x32xf32>
    %42 = vector.extract_strided_slice %18 {offsets = [0, 224], sizes = [16, 32], strides = [1, 1]} : vector<32x256xf32> to vector<16x32xf32>
    %43 = vector.extract_strided_slice %18 {offsets = [0, 128], sizes = [16, 32], strides = [1, 1]} : vector<32x256xf32> to vector<16x32xf32>
    %44 = vector.extract_strided_slice %18 {offsets = [0, 160], sizes = [16, 32], strides = [1, 1]} : vector<32x256xf32> to vector<16x32xf32>
    %45 = tpu.concatenate %43, %44 in 0 : vector<16x32xf32>, vector<16x32xf32> -> vector<32x32xf32>
    %cst_16 = arith.constant dense<0.000000e+00> : vector<32x16xf32>
    %46 = tpu.matmul %45, %41, %cst_16 {dimension_numbers = #tpu.dot_dimension_numbers<[1], [1], [0], [0], [0, 0, 1, 0], [], []>} : vector<32x32xf32>, vector<16x32xf32>, vector<32x16xf32> -> vector<32x16xf32>
    %cst_17 = arith.constant 0.176776692 : f32
    %47 = vector.broadcast %cst_17 : f32 to vector<32x16xf32>
    %48 = arith.mulf %46, %47 : vector<32x16xf32>
    %cst_18 = arith.constant dense<0xFF800000> : vector<32xf32>
    %49 = vector.multi_reduction <maximumf>, %48, %cst_18 [1] : vector<32x16xf32> to vector<32xf32>
    %50 = vector.shape_cast %49 : vector<32xf32> to vector<32x1xf32>
    %51 = vector.broadcast %50 : vector<32x1xf32> to vector<32x16xf32>
    %52 = arith.subf %48, %51 : vector<32x16xf32>
    %53 = math.exp %52 : vector<32x16xf32>
    %cst_19 = arith.constant dense<0.000000e+00> : vector<32xf32>
    %54 = vector.multi_reduction <add>, %53, %cst_19 [1] : vector<32x16xf32> to vector<32xf32>
    %55 = vector.shape_cast %54 : vector<32xf32> to vector<32x1xf32>
    %56 = vector.broadcast %55 : vector<32x1xf32> to vector<32x16xf32>
    %57 = arith.divf %53, %56 : vector<32x16xf32>
    %cst_20 = arith.constant dense<0.000000e+00> : vector<32x32xf32>
    %58 = tpu.matmul %57, %42, %cst_20 {dimension_numbers = #tpu.dot_dimension_numbers<[1], [0], [0], [1], [0, 0, 1, 1], [], []>} : vector<32x16xf32>, vector<16x32xf32>, vector<32x32xf32> -> vector<32x32xf32>
    %59 = vector.extract_strided_slice %58 {offsets = [0, 0], sizes = [16, 32], strides = [1, 1]} : vector<32x32xf32> to vector<16x32xf32>
    %c0_21 = arith.constant 0 : index
    %c64 = arith.constant 64 : index
    %60 = vector.load %arg10[%c0_21, %c64] : memref<32x128xf32, #tpu.memory_space<vmem>>, vector<16x32xf32>
    tpu.vector_store %arg10[%c0_21, %c64], %59 {strides = array<i32>} : memref<32x128xf32, #tpu.memory_space<vmem>>, vector<16x32xf32>,
    %61 = vector.extract_strided_slice %58 {offsets = [16, 0], sizes = [16, 32], strides = [1, 1]} : vector<32x32xf32> to vector<16x32xf32>
    %c0_22 = arith.constant 0 : index
    %c96 = arith.constant 96 : index
    %62 = vector.load %arg10[%c0_22, %c96] : memref<32x128xf32, #tpu.memory_space<vmem>>, vector<16x32xf32>
    tpu.vector_store %arg10[%c0_22, %c96], %61 {strides = array<i32>} : memref<32x128xf32, #tpu.memory_space<vmem>>, vector<16x32xf32>,
    %63 = vector.extract_strided_slice %18 {offsets = [16, 64], sizes = [16, 32], strides = [1, 1]} : vector<32x256xf32> to vector<16x32xf32>
    %64 = vector.extract_strided_slice %18 {offsets = [16, 96], sizes = [16, 32], strides = [1, 1]} : vector<32x256xf32> to vector<16x32xf32>
    %65 = vector.extract_strided_slice %18 {offsets = [16, 0], sizes = [16, 32], strides = [1, 1]} : vector<32x256xf32> to vector<16x32xf32>
    %66 = vector.extract_strided_slice %18 {offsets = [16, 32], sizes = [16, 32], strides = [1, 1]} : vector<32x256xf32> to vector<16x32xf32>
    %67 = tpu.concatenate %65, %66 in 0 : vector<16x32xf32>, vector<16x32xf32> -> vector<32x32xf32>
    %cst_23 = arith.constant dense<0.000000e+00> : vector<32x16xf32>
    %68 = tpu.matmul %67, %63, %cst_23 {dimension_numbers = #tpu.dot_dimension_numbers<[1], [1], [0], [0], [0, 0, 1, 0], [], []>} : vector<32x32xf32>, vector<16x32xf32>, vector<32x16xf32> -> vector<32x16xf32>
    %cst_24 = arith.constant 0.176776692 : f32
    %69 = vector.broadcast %cst_24 : f32 to vector<32x16xf32>
    %70 = arith.mulf %68, %69 : vector<32x16xf32>
    %cst_25 = arith.constant dense<0xFF800000> : vector<32xf32>
    %71 = vector.multi_reduction <maximumf>, %70, %cst_25 [1] : vector<32x16xf32> to vector<32xf32>
    %72 = vector.shape_cast %71 : vector<32xf32> to vector<32x1xf32>
    %73 = vector.broadcast %72 : vector<32x1xf32> to vector<32x16xf32>
    %74 = arith.subf %70, %73 : vector<32x16xf32>
    %75 = math.exp %74 : vector<32x16xf32>
    %cst_26 = arith.constant dense<0.000000e+00> : vector<32xf32>
    %76 = vector.multi_reduction <add>, %75, %cst_26 [1] : vector<32x16xf32> to vector<32xf32>
    %77 = vector.shape_cast %76 : vector<32xf32> to vector<32x1xf32>
    %78 = vector.broadcast %77 : vector<32x1xf32> to vector<32x16xf32>
    %79 = arith.divf %75, %78 : vector<32x16xf32>
    %cst_27 = arith.constant dense<0.000000e+00> : vector<32x32xf32>
    %80 = tpu.matmul %79, %64, %cst_27 {dimension_numbers = #tpu.dot_dimension_numbers<[1], [0], [0], [1], [0, 0, 1, 1], [], []>} : vector<32x16xf32>, vector<16x32xf32>, vector<32x32xf32> -> vector<32x32xf32>
    %81 = vector.extract_strided_slice %80 {offsets = [0, 0], sizes = [16, 32], strides = [1, 1]} : vector<32x32xf32> to vector<16x32xf32>
    %c16 = arith.constant 16 : index
    %c0_28 = arith.constant 0 : index
    %82 = vector.load %arg10[%c16, %c0_28] : memref<32x128xf32, #tpu.memory_space<vmem>>, vector<16x32xf32>
    tpu.vector_store %arg10[%c16, %c0_28], %81 {strides = array<i32>} : memref<32x128xf32, #tpu.memory_space<vmem>>, vector<16x32xf32>,
    %83 = vector.extract_strided_slice %80 {offsets = [16, 0], sizes = [16, 32], strides = [1, 1]} : vector<32x32xf32> to vector<16x32xf32>
    %c16_29 = arith.constant 16 : index
    %c32_30 = arith.constant 32 : index
    %84 = vector.load %arg10[%c16_29, %c32_30] : memref<32x128xf32, #tpu.memory_space<vmem>>, vector<16x32xf32>
    tpu.vector_store %arg10[%c16_29, %c32_30], %83 {strides = array<i32>} : memref<32x128xf32, #tpu.memory_space<vmem>>, vector<16x32xf32>,
    %85 = vector.extract_strided_slice %18 {offsets = [16, 192], sizes = [16, 32], strides = [1, 1]} : vector<32x256xf32> to vector<16x32xf32>
    %86 = vector.extract_strided_slice %18 {offsets = [16, 224], sizes = [16, 32], strides = [1, 1]} : vector<32x256xf32> to vector<16x32xf32>
    %87 = vector.extract_strided_slice %18 {offsets = [16, 128], sizes = [16, 32], strides = [1, 1]} : vector<32x256xf32> to vector<16x32xf32>
    %88 = vector.extract_strided_slice %18 {offsets = [16, 160], sizes = [16, 32], strides = [1, 1]} : vector<32x256xf32> to vector<16x32xf32>
    %89 = tpu.concatenate %87, %88 in 0 : vector<16x32xf32>, vector<16x32xf32> -> vector<32x32xf32>
    %cst_31 = arith.constant dense<0.000000e+00> : vector<32x16xf32>
    %90 = tpu.matmul %89, %85, %cst_31 {dimension_numbers = #tpu.dot_dimension_numbers<[1], [1], [0], [0], [0, 0, 1, 0], [], []>} : vector<32x32xf32>, vector<16x32xf32>, vector<32x16xf32> -> vector<32x16xf32>
    %cst_32 = arith.constant 0.176776692 : f32
    %91 = vector.broadcast %cst_32 : f32 to vector<32x16xf32>
    %92 = arith.mulf %90, %91 : vector<32x16xf32>
    %cst_33 = arith.constant dense<0xFF800000> : vector<32xf32>
    %93 = vector.multi_reduction <maximumf>, %92, %cst_33 [1] : vector<32x16xf32> to vector<32xf32>
    %94 = vector.shape_cast %93 : vector<32xf32> to vector<32x1xf32>
    %95 = vector.broadcast %94 : vector<32x1xf32> to vector<32x16xf32>
    %96 = arith.subf %92, %95 : vector<32x16xf32>
    %97 = math.exp %96 : vector<32x16xf32>
    %cst_34 = arith.constant dense<0.000000e+00> : vector<32xf32>
    %98 = vector.multi_reduction <add>, %97, %cst_34 [1] : vector<32x16xf32> to vector<32xf32>
    %99 = vector.shape_cast %98 : vector<32xf32> to vector<32x1xf32>
    %100 = vector.broadcast %99 : vector<32x1xf32> to vector<32x16xf32>
    %101 = arith.divf %97, %100 : vector<32x16xf32>
    %cst_35 = arith.constant dense<0.000000e+00> : vector<32x32xf32>
    %102 = tpu.matmul %101, %86, %cst_35 {dimension_numbers = #tpu.dot_dimension_numbers<[1], [0], [0], [1], [0, 0, 1, 1], [], []>} : vector<32x16xf32>, vector<16x32xf32>, vector<32x32xf32> -> vector<32x32xf32>
    %103 = vector.extract_strided_slice %102 {offsets = [0, 0], sizes = [16, 32], strides = [1, 1]} : vector<32x32xf32> to vector<16x32xf32>
    %c16_36 = arith.constant 16 : index
    %c64_37 = arith.constant 64 : index
    %104 = vector.load %arg10[%c16_36, %c64_37] : memref<32x128xf32, #tpu.memory_space<vmem>>, vector<16x32xf32>
    tpu.vector_store %arg10[%c16_36, %c64_37], %103 {strides = array<i32>} : memref<32x128xf32, #tpu.memory_space<vmem>>, vector<16x32xf32>,
    %105 = vector.extract_strided_slice %102 {offsets = [16, 0], sizes = [16, 32], strides = [1, 1]} : vector<32x32xf32> to vector<16x32xf32>
    %c16_38 = arith.constant 16 : index
    %c96_39 = arith.constant 96 : index
    %106 = vector.load %arg10[%c16_38, %c96_39] : memref<32x128xf32, #tpu.memory_space<vmem>>, vector<16x32xf32>
    tpu.vector_store %arg10[%c16_38, %c96_39], %105 {strides = array<i32>} : memref<32x128xf32, #tpu.memory_space<vmem>>, vector<16x32xf32>,
    %c0_40 = arith.constant 0 : index
    %c0_41 = arith.constant 0 : index
    %107 = vector.load %arg10[%c0_40, %c0_41] : memref<32x128xf32, #tpu.memory_space<vmem>>, vector<32x128xf32>
    %108 = arith.truncf %107 : vector<32x128xf32> to vector<32x128xbf16>
    %c0_42 = arith.constant 0 : index
    %c0_43 = arith.constant 0 : index
    %109 = vector.load %arg3[%c0_42, %c0_43] : memref<128x128xbf16, #tpu.memory_space<vmem>>, vector<128x128xbf16>
    %cst_44 = arith.constant dense<0.000000e+00> : vector<32x128xf32>
    %110 = tpu.matmul %108, %109, %cst_44 {dimension_numbers = #tpu.dot_dimension_numbers<[1], [0], [0], [1], [0, 0, 1, 1], [], []>} : vector<32x128xbf16>, vector<128x128xbf16>, vector<32x128xf32> -> vector<32x128xf32>
    %111 = arith.addf %4, %110 : vector<32x128xf32>
    %112 = arith.mulf %111, %111 : vector<32x128xf32>
    %cst_45 = arith.constant dense<0.000000e+00> : vector<32xf32>
    %113 = vector.multi_reduction <add>, %112, %cst_45 [1] : vector<32x128xf32> to vector<32xf32>
    %114 = vector.shape_cast %113 : vector<32xf32> to vector<32x1xf32>
    %cst_46 = arith.constant 1.280000e+02 : f32
    %115 = vector.broadcast %cst_46 : f32 to vector<32x1xf32>
    %116 = arith.divf %114, %115 : vector<32x1xf32>
    %cst_47 = arith.constant 9.99999997E-7 : f32
    %117 = vector.broadcast %cst_47 : f32 to vector<32x1xf32>
    %118 = arith.addf %116, %117 : vector<32x1xf32>
    %119 = math.rsqrt %118 : vector<32x1xf32>
    %120 = vector.broadcast %119 : vector<32x1xf32> to vector<32x128xf32>
    %121 = arith.mulf %111, %120 : vector<32x128xf32>
    %122 = vector.broadcast %5 : vector<1x128xf32> to vector<32x128xf32>
    %123 = arith.mulf %121, %122 : vector<32x128xf32>
    %c0_i32_48 = arith.constant 0 : i32
    %124 = tpu.memref_slice %arg11[%c0_i32_48] : memref<2x!tpu.dma_semaphore, #tpu.memory_space<semaphore_mem>> -> memref<1x!tpu.dma_semaphore, #tpu.memory_space<semaphore_mem>>
    %125 = tpu.memref_squeeze %124 : memref<1x!tpu.dma_semaphore, #tpu.memory_space<semaphore_mem>> -> memref<!tpu.dma_semaphore, #tpu.memory_space<semaphore_mem>>
    tpu.wait_dma2 semaphore(%125 : memref<!tpu.dma_semaphore, #tpu.memory_space<semaphore_mem>>) src(%arg4 : memref<128x512xbf16, #tpu.memory_space<any>>) dst(%arg8 : memref<128x512xbf16, #tpu.memory_space<vmem>>)
    %c1_i32_49 = arith.constant 1 : i32
    %126 = tpu.memref_slice %arg11[%c1_i32_49] : memref<2x!tpu.dma_semaphore, #tpu.memory_space<semaphore_mem>> -> memref<1x!tpu.dma_semaphore, #tpu.memory_space<semaphore_mem>>
    %127 = tpu.memref_squeeze %126 : memref<1x!tpu.dma_semaphore, #tpu.memory_space<semaphore_mem>> -> memref<!tpu.dma_semaphore, #tpu.memory_space<semaphore_mem>>
    tpu.wait_dma2 semaphore(%127 : memref<!tpu.dma_semaphore, #tpu.memory_space<semaphore_mem>>) src(%arg5 : memref<256x128xbf16, #tpu.memory_space<any>>) dst(%arg9 : memref<256x128xbf16, #tpu.memory_space<vmem>>)
    %128 = arith.truncf %123 : vector<32x128xf32> to vector<32x128xbf16>
    %c0_50 = arith.constant 0 : index
    %c0_51 = arith.constant 0 : index
    %129 = vector.load %arg8[%c0_50, %c0_51] : memref<128x512xbf16, #tpu.memory_space<vmem>>, vector<128x512xbf16>
    %cst_52 = arith.constant dense<0.000000e+00> : vector<32x512xf32>
    %130 = tpu.matmul %128, %129, %cst_52 {dimension_numbers = #tpu.dot_dimension_numbers<[1], [0], [0], [1], [0, 0, 1, 1], [], []>} : vector<32x128xbf16>, vector<128x512xbf16>, vector<32x512xf32> -> vector<32x512xf32>
    %131 = vector.extract_strided_slice %130 {offsets = [0, 0], sizes = [32, 256], strides = [1, 1]} : vector<32x512xf32> to vector<32x256xf32>
    %132 = vector.extract_strided_slice %130 {offsets = [0, 256], sizes = [32, 256], strides = [1, 1]} : vector<32x512xf32> to vector<32x256xf32>
    %133 = arith.negf %131 : vector<32x256xf32>
    %134 = math.exp %133 : vector<32x256xf32>
    %cst_53 = arith.constant 1.000000e+00 : f32
    %135 = vector.broadcast %cst_53 : f32 to vector<32x256xf32>
    %136 = arith.addf %135, %134 : vector<32x256xf32>
    %137 = arith.divf %135, %136 : vector<32x256xf32>
    %138 = arith.mulf %131, %137 : vector<32x256xf32>
    %139 = arith.mulf %138, %132 : vector<32x256xf32>
    %140 = arith.truncf %139 : vector<32x256xf32> to vector<32x256xbf16>
    %c0_54 = arith.constant 0 : index
    %c0_55 = arith.constant 0 : index
    %141 = vector.load %arg9[%c0_54, %c0_55] : memref<256x128xbf16, #tpu.memory_space<vmem>>, vector<256x128xbf16>
    %cst_56 = arith.constant dense<0.000000e+00> : vector<32x128xf32>
    %142 = tpu.matmul %140, %141, %cst_56 {dimension_numbers = #tpu.dot_dimension_numbers<[1], [0], [0], [1], [0, 0, 1, 1], [], []>} : vector<32x256xbf16>, vector<256x128xbf16>, vector<32x128xf32> -> vector<32x128xf32>
    %143 = arith.addf %123, %142 : vector<32x128xf32>
    %c0_57 = arith.constant 0 : index
    %c0_58 = arith.constant 0 : index
    %144 = vector.load %arg7[%c0_57, %c0_58] : memref<32x128xf32, #tpu.memory_space<vmem>>, vector<32x128xf32>
    tpu.vector_store %arg7[%c0_57, %c0_58], %143 {strides = array<i32>} : memref<32x128xf32, #tpu.memory_space<vmem>>, vector<32x128xf32>,
    return
  }
  func.func @transform_0(%arg0: i32) -> (i32, i32) {
    %c0_i32 = arith.constant 0 : i32
    %c0_i32_0 = arith.constant 0 : i32
    %c0_i32_1 = arith.constant 0 : i32
    return %c0_i32, %c0_i32_0 : i32, i32
  }
  func.func @transform_1(%arg0: i32) -> (i32, i32) {
    %c0_i32 = arith.constant 0 : i32
    %c0_i32_0 = arith.constant 0 : i32
    %c0_i32_1 = arith.constant 0 : i32
    return %c0_i32, %c0_i32_0 : i32, i32
  }
  func.func @transform_2(%arg0: i32) -> (i32, i32) {
    %c0_i32 = arith.constant 0 : i32
    %c0_i32_0 = arith.constant 0 : i32
    %c0_i32_1 = arith.constant 0 : i32
    return %c0_i32, %c0_i32_0 : i32, i32
  }
  func.func @transform_5(%arg0: i32) -> (i32, i32) {
    %c0_i32 = arith.constant 0 : i32
    %c0_i32_0 = arith.constant 0 : i32
    %c0_i32_1 = arith.constant 0 : i32
    return %c0_i32, %c0_i32_0 : i32, i32
  }
  func.func @transform_6(%arg0: i32) -> (i32, i32) {
    %c0_i32 = arith.constant 0 : i32
    %c0_i32_0 = arith.constant 0 : i32
    %c0_i32_1 = arith.constant 0 : i32
    return %c0_i32, %c0_i32_0 : i32, i32
  }
}

</mosaic_0001>

<llo_original>
// kernel: tpu_custom_call.1
$region0: #{tpu_custom_call.1}
  #allocation0 [shape = 'u32[]', space=smem, size = 0x4, offset = 0x4, fixed_abs, tag = 'smem constant byte address 0x4 - core index']
  #allocation1 [shape = 'u32[144,128]{1,0:T(1,128)}', space=vmem, size = 0x12000, scoped, tag = 'internal scratch']
  #allocation2 [shape = 'bf16[128,512]{1,0:T(16,128)(2,1)}', space=vmem, size = 0x20000, scoped, tag = 'scratch operand']
  #allocation3 [shape = 'bf16[256,128]{1,0:T(16,128)(2,1)}', space=vmem, size = 0x10000, scoped, tag = 'scratch operand']
  #allocation4 [shape = 'f32[32,128]{1,0:T(8,128)}', space=vmem, size = 0x4000, scoped, tag = 'scratch operand']
  #allocation5 [shape = 's32[2]{0}', space=sflag, size = 0x8, scoped, tag = 'scratch operand']
  #allocation13 [shape = 's32[]', space=sflag, size = 0x4, offset = 0, fixed_abs, tag = 'sflag constant byte address 0x0 - dummy sync flag']
  #allocation15 [shape = 's32[]', space=sflag, size = 0x4, offset = 0, fixed_abs, tag = 'sflag constant byte address 0x0 - dummy sync flag']
  #allocation16 [shape = 's32[]', space=sflag, size = 0x4, offset = 0, fixed_abs, tag = 'sflag constant byte address 0x0 - dummy sync flag']
  #allocation17 [shape = 'u32[]', space=smem, size = 0x4, offset = 0x44, fixed_abs, tag = 'smem constant byte address 0x44 - assertion arg 0']
  #allocation18 [shape = 'u32[]', space=smem, size = 0x4, offset = 0x48, fixed_abs, tag = 'smem constant byte address 0x48 - assertion arg 1']
  %s0 = inlined_call_operand.hbm [shape: f32[32,128], index: 0, kind: input, shape index: {}]
  %s1 = inlined_call_operand.hbm [shape: bf16[128,256], index: 1, kind: input, shape index: {}]
  %s2 = inlined_call_operand.hbm [shape: bf16[128,128], index: 2, kind: input, shape index: {}]
  %s3 = inlined_call_operand.hbm [shape: bf16[128,512], index: 3, kind: input, shape index: {}]
  %s4 = inlined_call_operand.hbm [shape: bf16[256,128], index: 4, kind: input, shape index: {}]
  %s5 = inlined_call_operand.vmem [shape: f32[1,128], index: 5, kind: input, shape index: {}]
  %s6 = inlined_call_operand.hbm [shape: f32[32,128], index: 6, kind: output, shape index: {}]
  %s7 = sld [smem:[#allocation0]]
  $region42: #{tpu_custom_call.1} parent=0
    _
  %s9 = ssub.s32 1, %s7
  %s10 = scalar_select 0, %s9, %s7
  $region1: #{tpu_custom_call.1} parent=0
    #allocation6 [shape = 'u8[16384]{0}', space=vmem, size = 0x4000, scoped, tag = 'input window, operand 0, single buffered']
    #allocation7 [shape = 's32[1]{0}', space=sflag, size = 0x4, scoped, tag = 'scoped memory for tpu_custom_call.1']
    #allocation8 [shape = 's32[1]{0}', space=sflag, size = 0x4, scoped, tag = 'scoped memory for tpu_custom_call.1']
    #allocation9 [shape = 'u8[65536]{0}', space=vmem, size = 0x10000, scoped, tag = 'input window, operand 1, single buffered']
    #allocation10 [shape = 's32[1]{0}', space=sflag, size = 0x4, scoped, tag = 'scoped memory for tpu_custom_call.1']
    #allocation11 [shape = 'u8[32768]{0}', space=vmem, size = 0x8000, scoped, tag = 'input window, operand 2, single buffered']
    #allocation12 [shape = 'u8[16384]{0}', space=vmem, size = 0x4000, scoped, tag = 'output window, operand 0, single buffered']
    #allocation14 [shape = 'u32[9]{0}', space=smem, size = 0x24, scoped, tag = 'DMA stride descriptor']
    %11 = vsyncpa [#allocation7], 0
    %12 = vsyncpa [#allocation10], 0
    %13 = vsyncpa [#allocation8], 0
    // Predicated region
    $region2: #{tpu_custom_call.1} parent=1 // pred_check
      _
    $region3: #{tpu_custom_call.1} parent=1 // pred_check_branch
      %15 = sbr.rel (0) target = $region5
    $region4: #{tpu_custom_call.1} parent=1 // pred_region
      %s17 = ssub.s32 512, 512
      %18 = vsyncadd [#allocation7], %s17
      %s19 = sshll.u32 [#allocation6], 4
      %s20 = int_to_ptr.vmem [resolvable:$true] %s19
      %25 = dma.hbm_to_vmem [thread:$0]  %s0, 512, %s20, [#allocation7], 128, 128, 8
    $region5: #{tpu_custom_call.1} parent=1 // pred_fallthru
      _
    // Predicated region
    $region6: #{tpu_custom_call.1} parent=1 // pred_check
      _
    $region7: #{tpu_custom_call.1} parent=1 // pred_check_branch
      %27 = sbr.rel (0) target = $region9
    $region8: #{tpu_custom_call.1} parent=1 // pred_region
      %s29 = ssub.s32 2048, 2048
      %30 = vsyncadd [#allocation10], %s29
      %s31 = sshll.u32 [#allocation9], 4
      %s32 = int_to_ptr.vmem [resolvable:$true] %s31
      %37 = dma.hbm_to_vmem [thread:$0]  %s1, 2048, %s32, [#allocation10], 128, 128, 8
    $region9: #{tpu_custom_call.1} parent=1 // pred_fallthru
      _
    // Predicated region
    $region10: #{tpu_custom_call.1} parent=1 // pred_check
      _
    $region11: #{tpu_custom_call.1} parent=1 // pred_check_branch
      %39 = sbr.rel (0) target = $region13
    $region12: #{tpu_custom_call.1} parent=1 // pred_region
      %s41 = ssub.s32 1024, 1024
      %42 = vsyncadd [#allocation10], %s41
      %s43 = sshll.u32 [#allocation11], 4
      %s44 = int_to_ptr.vmem [resolvable:$true] %s43
      %49 = dma.hbm_to_vmem [thread:$0]  %s2, 1024, %s44, [#allocation10], 64, 64, 4
    $region13: #{tpu_custom_call.1} parent=1 // pred_fallthru
      _
    // Predicated region
    $region14: #{tpu_custom_call.1} parent=1 // pred_check
      _
    $region15: #{tpu_custom_call.1} parent=1 // pred_check_branch
      %51 = sbr.rel (0) target = $region17
    $region16: #{tpu_custom_call.1} parent=1 // pred_region
      _
    $region17: #{tpu_custom_call.1} parent=1 // pred_fallthru
      _
    // Predicated region
    $region18: #{tpu_custom_call.1} parent=1 // pred_check
      _
    $region19: #{tpu_custom_call.1} parent=1 // pred_check_branch
      %53 = sbr.rel (0) target = $region21
    $region20: #{tpu_custom_call.1} parent=1 // pred_region
      %54 = dma.done [#allocation7], 512
    $region21: #{tpu_custom_call.1} parent=1 // pred_fallthru
      _
    // Predicated region
    $region22: #{tpu_custom_call.1} parent=1 // pred_check
      _
    $region23: #{tpu_custom_call.1} parent=1 // pred_check_branch
      %56 = sbr.rel (0) target = $region25
    $region24: #{tpu_custom_call.1} parent=1 // pred_region
      %57 = dma.done [#allocation10], 2048
    $region25: #{tpu_custom_call.1} parent=1 // pred_fallthru
      _
    // Predicated region
    $region26: #{tpu_custom_call.1} parent=1 // pred_check
      _
    $region27: #{tpu_custom_call.1} parent=1 // pred_check_branch
      %59 = sbr.rel (0) target = $region29
    $region28: #{tpu_custom_call.1} parent=1 // pred_region
      %60 = dma.done [#allocation10], 1024
    $region29: #{tpu_custom_call.1} parent=1 // pred_fallthru
      _
    %s63 = sshll.u32 1, 14
    %s64 = sxor.u32 4294967295, %s63
    %s66 = sld [smem:[#allocation0]]
    %s67 = sadd.s32 2, %s66
    %s69 = sshll.u32 7, 26
    %s70 = sxor.u32 4294967295, %s69
    %s71 = sand.u32 0, %s70
    %s72 = sshll.u32 %s67, 26
    %s73 = sor.u32 %s71, %s72
    %s74 = sshll.u32 [#allocation2], 4
    %s75 = int_to_ptr.vmem [resolvable:$true] %s74
    %78 = sst [smem:[#allocation14]] 512
    %s79 = scalar_lea.smem [#allocation14], 1
    %80 = sst [smem:[%s79]] 512
    %s81 = scalar_lea.smem [#allocation14], 2
    %82 = sst [smem:[%s81]] 4
    %s83 = scalar_lea.smem [#allocation14], 3
    %84 = sst [smem:[%s83]] 64
    %s85 = scalar_lea.smem [#allocation14], 4
    %86 = sst [smem:[%s85]] 128
    %s87 = scalar_lea.smem [#allocation14], 5
    %88 = sst [smem:[%s87]] 2
    %s89 = scalar_lea.smem [#allocation14], 6
    %90 = sst [smem:[%s89]] 256
    %s91 = scalar_lea.smem [#allocation14], 7
    %92 = sst [smem:[%s91]] 64
    %s93 = scalar_lea.smem [#allocation14], 8
    %94 = sst [smem:[%s93]] 4
    %96 = dma.general %s3, 4096, %s75, [#allocation5], [#allocation13], [#allocation14], %s73, 0
    %s97 = scalar_lea.sflag [#allocation5], 1
    // Predicated region
    $region30: #{tpu_custom_call.1} parent=1 // pred_check
      _
    $region31: #{tpu_custom_call.1} parent=1 // pred_check_branch
      %99 = sbr.rel target = $region33
    $region32: #{tpu_custom_call.1} parent=1 // pred_region
      %100 = sst [smem:[#allocation17]] [#allocation16]
      %101 = sst [smem:[#allocation18]] [#allocation15]
    $region33: #{tpu_custom_call.1} parent=1 // pred_fallthru
      _
    %103 = shalt.err (0)
    %s105 = sshll.u32 [#allocation3], 4
    %s106 = int_to_ptr.vmem [resolvable:$true] %s105
    %108 = dma.hbm_to_vmem [thread:$0]  %s4, 2048, %s106, %s97
    %v109 = vld [vmem:[#allocation6] sm:$0xff]
    %v110 = vld [vmem:[#allocation6 + $0x8] sm:$0xff]
    %v111 = vld [vmem:[#allocation6 + $0x10] sm:$0xff]
    %v112 = vld [vmem:[#allocation6 + $0x18] sm:$0xff]
    %v113 = vld [vmem:[%s5] sm:$0x1]
    %v114 = vmul.f32 %v109, %v109
    %v115 = vmul.f32 %v110, %v110
    %v116 = vmul.f32 %v111, %v111
    %v117 = vmul.f32 %v112, %v112
    %118 = vadd.xlane.f32.xlu0 %v114
    %v119 = vpop.xlane.xlu0 %118
    %120 = vadd.xlane.f32.xlu0 %v115
    %v121 = vpop.xlane.xlu0 %120
    %122 = vadd.xlane.f32.xlu0 %v116
    %v123 = vpop.xlane.xlu0 %122
    %124 = vadd.xlane.f32.xlu0 %v117
    %v125 = vpop.xlane.xlu0 %124
    %v126 = vrcp.pop 128.0
    %v127 = vmul.f32 %v119, %v126
    %v128 = vmul.f32 %v121, %v126
    %v129 = vmul.f32 %v123, %v126
    %v130 = vmul.f32 %v125, %v126
    %v131 = vadd.f32 %v127, 1e-06
    %v132 = vadd.f32 %v128, 1e-06
    %v133 = vadd.f32 %v129, 1e-06
    %v134 = vadd.f32 %v130, 1e-06
    %v135 = vrsqrt.pop %v131
    %v136 = vrsqrt.pop %v132
    %v137 = vrsqrt.pop %v133
    %v138 = vrsqrt.pop %v134
    %v139 = vmul.f32 %v109, %v135
    %v140 = vmul.f32 %v110, %v136
    %v141 = vmul.f32 %v111, %v137
    %v142 = vmul.f32 %v112, %v138
    %v143 = vpack.c.bf16 %v140, %v139
    %v144 = vpack.c.bf16 %v142, %v141
    %v145 = vld [vmem:[#allocation9] sm:$0xff]
    %v146 = vld [vmem:[#allocation9 + $0x8] sm:$0xff]
    %v147 = vld [vmem:[#allocation9 + $0x10] sm:$0xff]
    %v148 = vld [vmem:[#allocation9 + $0x18] sm:$0xff]
    %v149 = vld [vmem:[#allocation9 + $0x20] sm:$0xff]
    %v150 = vld [vmem:[#allocation9 + $0x28] sm:$0xff]
    %v151 = vld [vmem:[#allocation9 + $0x30] sm:$0xff]
    %v152 = vld [vmem:[#allocation9 + $0x38] sm:$0xff]
    %v153 = vld [vmem:[#allocation9 + $0x40] sm:$0xff]
    %v154 = vld [vmem:[#allocation9 + $0x48] sm:$0xff]
    %v155 = vld [vmem:[#allocation9 + $0x50] sm:$0xff]
    %v156 = vld [vmem:[#allocation9 + $0x58] sm:$0xff]
    %v157 = vld [vmem:[#allocation9 + $0x60] sm:$0xff]
    %v158 = vld [vmem:[#allocation9 + $0x68] sm:$0xff]
    %v159 = vld [vmem:[#allocation9 + $0x70] sm:$0xff]
    %v160 = vld [vmem:[#allocation9 + $0x78] sm:$0xff]
    %v177 = vunpack.c.l.b16 %v145
    %v178 = vunpack.c.h.b16 %v145
    %v179 = vunpack.c.l.b16 %v146
    %v180 = vunpack.c.h.b16 %v146
    %v181 = vunpack.c.l.b16 %v147
    %v182 = vunpack.c.h.b16 %v147
    %v183 = vunpack.c.l.b16 %v148
    %v184 = vunpack.c.h.b16 %v148
    %v185 = vunpack.c.l.b16 %v149
    %v186 = vunpack.c.h.b16 %v149
    %v187 = vunpack.c.l.b16 %v150
    %v188 = vunpack.c.h.b16 %v150
    %v189 = vunpack.c.l.b16 %v151
    %v190 = vunpack.c.h.b16 %v151
    %v191 = vunpack.c.l.b16 %v152
    %v192 = vunpack.c.h.b16 %v152
    %v193 = vunpack.c.l.b16 %v153
    %v194 = vunpack.c.h.b16 %v153
    %v195 = vunpack.c.l.b16 %v154
    %v196 = vunpack.c.h.b16 %v154
    %v197 = vunpack.c.l.b16 %v155
    %v198 = vunpack.c.h.b16 %v155
    %v199 = vunpack.c.l.b16 %v156
    %v200 = vunpack.c.h.b16 %v156
    %v201 = vunpack.c.l.b16 %v157
    %v202 = vunpack.c.h.b16 %v157
    %v203 = vunpack.c.l.b16 %v158
    %v204 = vunpack.c.h.b16 %v158
    %v205 = vunpack.c.l.b16 %v159
    %v206 = vunpack.c.h.b16 %v159
    %v207 = vunpack.c.l.b16 %v160
    %v208 = vunpack.c.h.b16 %v160
    %v209 = vpack.c.b16 %v179, %v177
    %v210 = vpack.c.b16 %v180, %v178
    %v211 = vpack.c.b16 %v183, %v181
    %v212 = vpack.c.b16 %v184, %v182
    %v213 = vpack.c.b16 %v187, %v185
    %v214 = vpack.c.b16 %v188, %v186
    %v215 = vpack.c.b16 %v191, %v189
    %v216 = vpack.c.b16 %v192, %v190
    %v217 = vpack.c.b16 %v195, %v193
    %v218 = vpack.c.b16 %v196, %v194
    %v219 = vpack.c.b16 %v199, %v197
    %v220 = vpack.c.b16 %v200, %v198
    %v221 = vpack.c.b16 %v203, %v201
    %v222 = vpack.c.b16 %v204, %v202
    %v223 = vpack.c.b16 %v207, %v205
    %v224 = vpack.c.b16 %v208, %v206
    %241 = vmatprep.subr.bf16.mxu0 %v210
    %242 = vmatpush1.bf16.msra.mxu0 %v209
    %243 = vmatprep.subr.bf16.mxu0 %v212
    %244 = vmatpush1.bf16.msra.mxu0 %v211
    %245 = vmatprep.subr.bf16.mxu0 %v214
    %246 = vmatpush1.bf16.msra.mxu0 %v213
    %247 = vmatprep.subr.bf16.mxu0 %v216
    %248 = vmatpush1.bf16.msra.mxu0 %v215
    %249 = vmatprep.subr.bf16.mxu0 %v218
    %250 = vmatpush1.bf16.msra.mxu0 %v217
    %251 = vmatprep.subr.bf16.mxu0 %v220
    %252 = vmatpush1.bf16.msra.mxu0 %v219
    %253 = vmatprep.subr.bf16.mxu0 %v222
    %254 = vmatpush1.bf16.msra.mxu0 %v221
    %255 = vmatprep.subr.bf16.mxu0 %v224
    %256 = vmatpush1.bf16.msra.mxu0 %v223
    %257 = vmatprep.subr.bf16.mxu0 0
    %258 = vmatpush1.bf16.msra.mxu0 0
    %259 = vmatprep.subr.bf16.mxu0 0
    %260 = vmatpush1.bf16.msra.mxu0 0
    %261 = vmatprep.subr.bf16.mxu0 0
    %262 = vmatpush1.bf16.msra.mxu0 0
    %263 = vmatprep.subr.bf16.mxu0 0
    %264 = vmatpush1.bf16.msra.mxu0 0
    %265 = vmatprep.subr.bf16.mxu0 0
    %266 = vmatpush1.bf16.msra.mxu0 0
    %267 = vmatprep.subr.bf16.mxu0 0
    %268 = vmatpush1.bf16.msra.mxu0 0
    %269 = vmatprep.subr.bf16.mxu0 0
    %270 = vmatpush1.bf16.msra.mxu0 0
    %271 = vmatprep.subr.bf16.mxu0 0
    %272 = vmatpush1.bf16.msra.mxu0 0
    %273 = vmatprep.mubr.bf16.mxu0 0
    %274 = vmatmul.mubr.bf16.gmra.mrb[0].mxu0 %v143
    %v275 = vpop.f32.mrb[0].mxu0
    %v276 = vadd.f32 0.0, %v275
    %v277 = vpop.f32.mrb[0].mxu0
    %v278 = vadd.f32 0.0, %v277
    %v279 = vpop.f32.mrb[0].mxu0
    %v280 = vadd.f32 0.0, %v279
    %v281 = vpop.f32.mrb[0].mxu0
    %v282 = vadd.f32 0.0, %v281
    %283 = vmatprep.mubr.bf16.mxu0 0
    %284 = vmatmul.mubr.bf16.gmra.mrb[0].mxu0 %v144
    %v285 = vpop.f32.mrb[0].mxu0
    %v286 = vadd.f32 0.0, %v285
    %v287 = vpop.f32.mrb[0].mxu0
    %v288 = vadd.f32 0.0, %v287
    %v289 = vpop.f32.mrb[0].mxu0
    %v290 = vadd.f32 0.0, %v289
    %v291 = vpop.f32.mrb[0].mxu0
    %v292 = vadd.f32 0.0, %v291
    %293 = vdwg.mxu0
    %296 = vrot.lane.b32.xlu0 %v276, 96
    %v297 = vpop.permute.xlu0 %296
    %298 = vrot.lane.b32.xlu0 %v280, 96
    %v299 = vpop.permute.xlu0 %298
    %300 = vrot.lane.b32.xlu0 %v276, 64
    %v301 = vpop.permute.xlu0 %300
    %302 = vrot.lane.b32.xlu0 %v280, 64
    %v303 = vpop.permute.xlu0 %302
    %vm304 = vcmask 261120
    %v305 = vsel %vm304, %v276, 0
    %v307 = vsel %vm304, %v280, 0
    %v309 = vsel %vm304, %v297, 0
    %v311 = vsel %vm304, %v299, 0
    %v313 = vsel %vm304, %v301, 0
    %v315 = vsel %vm304, %v303, 0
    %317 = vmatprep.subr.mxu0 0.0
    %318 = vmatpush1.xpose.msra.mxu0 %v313
    %319 = vmatprep.subr.mxu0 0.0
    %320 = vmatpush1.xpose.msra.mxu0 %v315
    %321 = vmatprep.subr.mxu0 0.0
    %322 = vmatpush1.xpose.msra.mxu0 0.0
    %323 = vmatprep.subr.mxu0 0.0
    %324 = vmatpush1.xpose.msra.mxu0 0.0
    %325 = vmatprep.subr.mxu0 0.0
    %326 = vmatpush1.xpose.msra.mxu0 0.0
    %327 = vmatprep.subr.mxu0 0.0
    %328 = vmatpush1.xpose.msra.mxu0 0.0
    %329 = vmatprep.subr.mxu0 0.0
    %330 = vmatpush1.xpose.msra.mxu0 0.0
    %331 = vmatprep.subr.mxu0 0.0
    %332 = vmatpush1.xpose.msra.mxu0 0.0
    %333 = vmatprep.subr.mxu0 0.0
    %334 = vmatpush1.xpose.msra.mxu0 0.0
    %335 = vmatprep.subr.mxu0 0.0
    %336 = vmatpush1.xpose.msra.mxu0 0.0
    %337 = vmatprep.subr.mxu0 0.0
    %338 = vmatpush1.xpose.msra.mxu0 0.0
    %339 = vmatprep.subr.mxu0 0.0
    %340 = vmatpush1.xpose.msra.mxu0 0.0
    %341 = vmatprep.subr.mxu0 0.0
    %342 = vmatpush1.xpose.msra.mxu0 0.0
    %343 = vmatprep.subr.mxu0 0.0
    %344 = vmatpush1.xpose.msra.mxu0 0.0
    %345 = vmatprep.subr.mxu0 0.0
    %346 = vmatpush1.xpose.msra.mxu0 0.0
    %347 = vmatprep.subr.mxu0 0.0
    %348 = vmatpush1.xpose.msra.mxu0 0.0
    %349 = vmatprep.subr.mxu0 0.0
    %350 = vmatpush1.xpose.msra.mxu0 0.0
    %351 = vmatprep.subr.mxu0 0.0
    %352 = vmatpush1.xpose.msra.mxu0 0.0
    %353 = vmatprep.subr.mxu0 0.0
    %354 = vmatpush1.xpose.msra.mxu0 0.0
    %355 = vmatprep.subr.mxu0 0.0
    %356 = vmatpush1.xpose.msra.mxu0 0.0
    %357 = vmatprep.subr.mxu0 0.0
    %358 = vmatpush1.xpose.msra.mxu0 0.0
    %359 = vmatprep.subr.mxu0 0.0
    %360 = vmatpush1.xpose.msra.mxu0 0.0
    %361 = vmatprep.subr.mxu0 0.0
    %362 = vmatpush1.xpose.msra.mxu0 0.0
    %363 = vmatprep.subr.mxu0 0.0
    %364 = vmatpush1.xpose.msra.mxu0 0.0
    %365 = vmatprep.subr.mxu0 0.0
    %366 = vmatpush1.xpose.msra.mxu0 0.0
    %367 = vmatprep.subr.mxu0 0.0
    %368 = vmatpush1.xpose.msra.mxu0 0.0
    %369 = vmatprep.subr.mxu0 0.0
    %370 = vmatpush1.xpose.msra.mxu0 0.0
    %371 = vmatprep.subr.mxu0 0.0
    %372 = vmatpush1.xpose.msra.mxu0 0.0
    %373 = vmatprep.subr.mxu0 0.0
    %374 = vmatpush1.xpose.msra.mxu0 0.0
    %375 = vmatprep.subr.mxu0 0.0
    %376 = vmatpush1.xpose.msra.mxu0 0.0
    %377 = vmatprep.subr.mxu0 0.0
    %378 = vmatpush1.xpose.msra.mxu0 0.0
    %379 = vmatprep.subr.mxu0 0.0
    %380 = vmatpush1.xpose.msra.mxu0 0.0
    %381 = vmatprep.mubr.f32.mxu0 0.0
    %382 = vmatmul.mubr.f32.gmra.mrb[0].mxu0 %v305
    %v383 = vpop.f32.mrb[0].mxu0
    %v384 = vadd.f32 0.0, %v383
    %v385 = vpop.f32.mrb[0].mxu0
    %386 = vmatprep.mubr.f32.mxu0 0.0
    %387 = vmatmul.mubr.f32.gmra.mrb[0].mxu0 %v307
    %v388 = vpop.f32.mrb[0].mxu0
    %v389 = vadd.f32 0.0, %v388
    %v390 = vpop.f32.mrb[0].mxu0
    %391 = vmatprep.mubr.f32.mxu0 0.0
    %392 = vmatmul.mubr.f32.gmra.mrb[0].mxu0 %v309
    %v393 = vpop.f32.mrb[0].mxu0
    %v394 = vadd.f32 0.0, %v393
    %v395 = vpop.f32.mrb[0].mxu0
    %396 = vmatprep.mubr.f32.mxu0 0.0
    %397 = vmatmul.mubr.f32.gmra.mrb[0].mxu0 %v311
    %v398 = vpop.f32.mrb[0].mxu0
    %v399 = vadd.f32 0.0, %v398
    %v400 = vpop.f32.mrb[0].mxu0
    %401 = vdwg.mxu0
    %v402 = vmul.f32 %v384, 0.17677669
    %v403 = vmul.f32 %v389, 0.17677669
    %v404 = vmul.f32 %v394, 0.17677669
    %v405 = vmul.f32 %v399, 0.17677669
    %vm406 = vcmask 130048
    %v407 = vsel %vm406, %v402, -inf
    %408 = vmax.xlane.f32.xlu0 %v407
    %v409 = vpop.xlane.xlu0 %408
    %v410 = vsel %vm406, %v403, -inf
    %411 = vmax.xlane.f32.xlu0 %v410
    %v412 = vpop.xlane.xlu0 %411
    %v413 = vsel %vm406, %v404, -inf
    %414 = vmax.xlane.f32.xlu0 %v413
    %v415 = vpop.xlane.xlu0 %414
    %v416 = vsel %vm406, %v405, -inf
    %417 = vmax.xlane.f32.xlu0 %v416
    %v418 = vpop.xlane.xlu0 %417
    %v419 = vsub.f32 %v402, %v409
    %v420 = vsub.f32 %v403, %v412
    %v421 = vsub.f32 %v404, %v415
    %v422 = vsub.f32 %v405, %v418
    %v423 = vmul.f32 %v419, 1.442695
    %v424 = vpow.pop %v423
    %v425 = vmul.f32 %v420, 1.442695
    %v426 = vpow.pop %v425
    %v427 = vmul.f32 %v421, 1.442695
    %v428 = vpow.pop %v427
    %v429 = vmul.f32 %v422, 1.442695
    %v430 = vpow.pop %v429
    %v431 = vsel %vm406, %v424, 0.0
    %432 = vadd.xlane.f32.xlu0 %v431
    %v433 = vpop.xlane.xlu0 %432
    %v434 = vsel %vm406, %v426, 0.0
    %435 = vadd.xlane.f32.xlu0 %v434
    %v436 = vpop.xlane.xlu0 %435
    %v437 = vsel %vm406, %v428, 0.0
    %438 = vadd.xlane.f32.xlu0 %v437
    %v439 = vpop.xlane.xlu0 %438
    %v440 = vsel %vm406, %v430, 0.0
    %441 = vadd.xlane.f32.xlu0 %v440
    %v442 = vpop.xlane.xlu0 %441
    %v443 = vrcp.pop %v433
    %v444 = vmul.f32 %v424, %v443
    %v445 = vrcp.pop %v436
    %v446 = vmul.f32 %v426, %v445
    %v447 = vrcp.pop %v439
    %v448 = vmul.f32 %v428, %v447
    %v449 = vrcp.pop %v442
    %v450 = vmul.f32 %v430, %v449
    %451 = vrot.lane.b32.xlu0 %v276, 32
    %v452 = vpop.permute.xlu0 %451
    %453 = vrot.lane.b32.xlu0 %v280, 32
    %v454 = vpop.permute.xlu0 %453
    %v458 = vsel %vm406, %v444, 0
    %v461 = vsel %vm406, %v446, 0
    %v464 = vsel %vm406, %v448, 0
    %v467 = vsel %vm406, %v450, 0
    %469 = vmatprep.subr.mxu0 0.0
    %470 = vmatpush1.msra.mxu0 %v452
    %471 = vmatprep.subr.mxu0 0.0
    %472 = vmatpush1.msra.mxu0 %v454
    %473 = vmatprep.subr.mxu0 0.0
    %474 = vmatpush1.msra.mxu0 0.0
    %475 = vmatprep.subr.mxu0 0.0
    %476 = vmatpush1.msra.mxu0 0.0
    %477 = vmatprep.subr.mxu0 0.0
    %478 = vmatpush1.msra.mxu0 0.0
    %479 = vmatprep.subr.mxu0 0.0
    %480 = vmatpush1.msra.mxu0 0.0
    %481 = vmatprep.subr.mxu0 0.0
    %482 = vmatpush1.msra.mxu0 0.0
    %483 = vmatprep.subr.mxu0 0.0
    %484 = vmatpush1.msra.mxu0 0.0
    %485 = vmatprep.subr.mxu0 0.0
    %486 = vmatpush1.msra.mxu0 0.0
    %487 = vmatprep.subr.mxu0 0.0
    %488 = vmatpush1.msra.mxu0 0.0
    %489 = vmatprep.subr.mxu0 0.0
    %490 = vmatpush1.msra.mxu0 0.0
    %491 = vmatprep.subr.mxu0 0.0
    %492 = vmatpush1.msra.mxu0 0.0
    %493 = vmatprep.subr.mxu0 0.0
    %494 = vmatpush1.msra.mxu0 0.0
    %495 = vmatprep.subr.mxu0 0.0
    %496 = vmatpush1.msra.mxu0 0.0
    %497 = vmatprep.subr.mxu0 0.0
    %498 = vmatpush1.msra.mxu0 0.0
    %499 = vmatprep.subr.mxu0 0.0
    %500 = vmatpush1.msra.mxu0 0.0
    %501 = vmatprep.subr.mxu0 0.0
    %502 = vmatpush1.msra.mxu0 0.0
    %503 = vmatprep.subr.mxu0 0.0
    %504 = vmatpush1.msra.mxu0 0.0
    %505 = vmatprep.subr.mxu0 0.0
    %506 = vmatpush1.msra.mxu0 0.0
    %507 = vmatprep.subr.mxu0 0.0
    %508 = vmatpush1.msra.mxu0 0.0
    %509 = vmatprep.subr.mxu0 0.0
    %510 = vmatpush1.msra.mxu0 0.0
    %511 = vmatprep.subr.mxu0 0.0
    %512 = vmatpush1.msra.mxu0 0.0
    %513 = vmatprep.subr.mxu0 0.0
    %514 = vmatpush1.msra.mxu0 0.0
    %515 = vmatprep.subr.mxu0 0.0
    %516 = vmatpush1.msra.mxu0 0.0
    %517 = vmatprep.subr.mxu0 0.0
    %518 = vmatpush1.msra.mxu0 0.0
    %519 = vmatprep.subr.mxu0 0.0
    %520 = vmatpush1.msra.mxu0 0.0
    %521 = vmatprep.subr.mxu0 0.0
    %522 = vmatpush1.msra.mxu0 0.0
    %523 = vmatprep.subr.mxu0 0.0
    %524 = vmatpush1.msra.mxu0 0.0
    %525 = vmatprep.subr.mxu0 0.0
    %526 = vmatpush1.msra.mxu0 0.0
    %527 = vmatprep.subr.mxu0 0.0
    %528 = vmatpush1.msra.mxu0 0.0
    %529 = vmatprep.subr.mxu0 0.0
    %530 = vmatpush1.msra.mxu0 0.0
    %531 = vmatprep.subr.mxu0 0.0
    %532 = vmatpush1.msra.mxu0 0.0
    %533 = vmatprep.mubr.f32.mxu0 0.0
    %534 = vmatmul.mubr.f32.gmra.mrb[0].mxu0 %v458
    %v535 = vpop.f32.mrb[0].mxu0
    %v536 = vadd.f32 0.0, %v535
    %v537 = vpop.f32.mrb[0].mxu0
    %538 = vmatprep.mubr.f32.mxu0 0.0
    %539 = vmatmul.mubr.f32.gmra.mrb[0].mxu0 %v461
    %v540 = vpop.f32.mrb[0].mxu0
    %v541 = vadd.f32 0.0, %v540
    %v542 = vpop.f32.mrb[0].mxu0
    %543 = vmatprep.mubr.f32.mxu0 0.0
    %544 = vmatmul.mubr.f32.gmra.mrb[0].mxu0 %v464
    %v545 = vpop.f32.mrb[0].mxu0
    %v546 = vadd.f32 0.0, %v545
    %v547 = vpop.f32.mrb[0].mxu0
    %548 = vmatprep.mubr.f32.mxu0 0.0
    %549 = vmatmul.mubr.f32.gmra.mrb[0].mxu0 %v467
    %v550 = vpop.f32.mrb[0].mxu0
    %v551 = vadd.f32 0.0, %v550
    %v552 = vpop.f32.mrb[0].mxu0
    %553 = vdwg.mxu0
    %554 = vst.msk [vmem:[#allocation4] sm:$0xff] %vm304, %v536
    %555 = vst.msk [vmem:[#allocation4 + $0x8] sm:$0xff] %vm304, %v541
    %558 = vrot.lane.b32.xlu0 %v546, 32
    %v559 = vpop.permute.xlu0 %558
    %560 = vrot.lane.b32.xlu0 %v551, 32
    %v561 = vpop.permute.xlu0 %560
    %vm564 = vcmask 523520
    %565 = vst.msk [vmem:[#allocation4] sm:$0xff] %vm564, %v559
    %566 = vst.msk [vmem:[#allocation4 + $0x8] sm:$0xff] %vm564, %v561
    %569 = vrot.lane.b32.xlu0 %v278, 96
    %v570 = vpop.permute.xlu0 %569
    %571 = vrot.lane.b32.xlu0 %v282, 96
    %v572 = vpop.permute.xlu0 %571
    %573 = vrot.lane.b32.xlu0 %v278, 64
    %v574 = vpop.permute.xlu0 %573
    %575 = vrot.lane.b32.xlu0 %v282, 64
    %v576 = vpop.permute.xlu0 %575
    %v577 = vsel %vm304, %v278, 0
    %v579 = vsel %vm304, %v282, 0
    %v581 = vsel %vm304, %v570, 0
    %v583 = vsel %vm304, %v572, 0
    %v585 = vsel %vm304, %v574, 0
    %v587 = vsel %vm304, %v576, 0
    %589 = vmatprep.subr.mxu0 0.0
    %590 = vmatpush1.xpose.msra.mxu0 %v585
    %591 = vmatprep.subr.mxu0 0.0
    %592 = vmatpush1.xpose.msra.mxu0 %v587
    %593 = vmatprep.subr.mxu0 0.0
    %594 = vmatpush1.xpose.msra.mxu0 0.0
    %595 = vmatprep.subr.mxu0 0.0
    %596 = vmatpush1.xpose.msra.mxu0 0.0
    %597 = vmatprep.subr.mxu0 0.0
    %598 = vmatpush1.xpose.msra.mxu0 0.0
    %599 = vmatprep.subr.mxu0 0.0
    %600 = vmatpush1.xpose.msra.mxu0 0.0
    %601 = vmatprep.subr.mxu0 0.0
    %602 = vmatpush1.xpose.msra.mxu0 0.0
    %603 = vmatprep.subr.mxu0 0.0
    %604 = vmatpush1.xpose.msra.mxu0 0.0
    %605 = vmatprep.subr.mxu0 0.0
    %606 = vmatpush1.xpose.msra.mxu0 0.0
    %607 = vmatprep.subr.mxu0 0.0
    %608 = vmatpush1.xpose.msra.mxu0 0.0
    %609 = vmatprep.subr.mxu0 0.0
    %610 = vmatpush1.xpose.msra.mxu0 0.0
    %611 = vmatprep.subr.mxu0 0.0
    %612 = vmatpush1.xpose.msra.mxu0 0.0
    %613 = vmatprep.subr.mxu0 0.0
    %614 = vmatpush1.xpose.msra.mxu0 0.0
    %615 = vmatprep.subr.mxu0 0.0
    %616 = vmatpush1.xpose.msra.mxu0 0.0
    %617 = vmatprep.subr.mxu0 0.0
    %618 = vmatpush1.xpose.msra.mxu0 0.0
    %619 = vmatprep.subr.mxu0 0.0
    %620 = vmatpush1.xpose.msra.mxu0 0.0
    %621 = vmatprep.subr.mxu0 0.0
    %622 = vmatpush1.xpose.msra.mxu0 0.0
    %623 = vmatprep.subr.mxu0 0.0
    %624 = vmatpush1.xpose.msra.mxu0 0.0
    %625 = vmatprep.subr.mxu0 0.0
    %626 = vmatpush1.xpose.msra.mxu0 0.0
    %627 = vmatprep.subr.mxu0 0.0
    %628 = vmatpush1.xpose.msra.mxu0 0.0
    %629 = vmatprep.subr.mxu0 0.0
    %630 = vmatpush1.xpose.msra.mxu0 0.0
    %631 = vmatprep.subr.mxu0 0.0
    %632 = vmatpush1.xpose.msra.mxu0 0.0
    %633 = vmatprep.subr.mxu0 0.0
    %634 = vmatpush1.xpose.msra.mxu0 0.0
    %635 = vmatprep.subr.mxu0 0.0
    %636 = vmatpush1.xpose.msra.mxu0 0.0
    %637 = vmatprep.subr.mxu0 0.0
    %638 = vmatpush1.xpose.msra.mxu0 0.0
    %639 = vmatprep.subr.mxu0 0.0
    %640 = vmatpush1.xpose.msra.mxu0 0.0
    %641 = vmatprep.subr.mxu0 0.0
    %642 = vmatpush1.xpose.msra.mxu0 0.0
    %643 = vmatprep.subr.mxu0 0.0
    %644 = vmatpush1.xpose.msra.mxu0 0.0
    %645 = vmatprep.subr.mxu0 0.0
    %646 = vmatpush1.xpose.msra.mxu0 0.0
    %647 = vmatprep.subr.mxu0 0.0
    %648 = vmatpush1.xpose.msra.mxu0 0.0
    %649 = vmatprep.subr.mxu0 0.0
    %650 = vmatpush1.xpose.msra.mxu0 0.0
    %651 = vmatprep.subr.mxu0 0.0
    %652 = vmatpush1.xpose.msra.mxu0 0.0
    %653 = vmatprep.mubr.f32.mxu0 0.0
    %654 = vmatmul.mubr.f32.gmra.mrb[0].mxu0 %v577
    %v655 = vpop.f32.mrb[0].mxu0
    %v656 = vadd.f32 0.0, %v655
    %v657 = vpop.f32.mrb[0].mxu0
    %658 = vmatprep.mubr.f32.mxu0 0.0
    %659 = vmatmul.mubr.f32.gmra.mrb[0].mxu0 %v579
    %v660 = vpop.f32.mrb[0].mxu0
    %v661 = vadd.f32 0.0, %v660
    %v662 = vpop.f32.mrb[0].mxu0
    %663 = vmatprep.mubr.f32.mxu0 0.0
    %664 = vmatmul.mubr.f32.gmra.mrb[0].mxu0 %v581
    %v665 = vpop.f32.mrb[0].mxu0
    %v666 = vadd.f32 0.0, %v665
    %v667 = vpop.f32.mrb[0].mxu0
    %668 = vmatprep.mubr.f32.mxu0 0.0
    %669 = vmatmul.mubr.f32.gmra.mrb[0].mxu0 %v583
    %v670 = vpop.f32.mrb[0].mxu0
    %v671 = vadd.f32 0.0, %v670
    %v672 = vpop.f32.mrb[0].mxu0
    %673 = vdwg.mxu0
    %v674 = vmul.f32 %v656, 0.17677669
    %v675 = vmul.f32 %v661, 0.17677669
    %v676 = vmul.f32 %v666, 0.17677669
    %v677 = vmul.f32 %v671, 0.17677669
    %v678 = vsel %vm406, %v674, -inf
    %679 = vmax.xlane.f32.xlu0 %v678
    %v680 = vpop.xlane.xlu0 %679
    %v681 = vsel %vm406, %v675, -inf
    %682 = vmax.xlane.f32.xlu0 %v681
    %v683 = vpop.xlane.xlu0 %682
    %v684 = vsel %vm406, %v676, -inf
    %685 = vmax.xlane.f32.xlu0 %v684
    %v686 = vpop.xlane.xlu0 %685
    %v687 = vsel %vm406, %v677, -inf
    %688 = vmax.xlane.f32.xlu0 %v687
    %v689 = vpop.xlane.xlu0 %688
    %v690 = vsub.f32 %v674, %v680
    %v691 = vsub.f32 %v675, %v683
    %v692 = vsub.f32 %v676, %v686
    %v693 = vsub.f32 %v677, %v689
    %v694 = vmul.f32 %v690, 1.442695
    %v695 = vpow.pop %v694
    %v696 = vmul.f32 %v691, 1.442695
    %v697 = vpow.pop %v696
    %v698 = vmul.f32 %v692, 1.442695
    %v699 = vpow.pop %v698
    %v700 = vmul.f32 %v693, 1.442695
    %v701 = vpow.pop %v700
    %v702 = vsel %vm406, %v695, 0.0
    %703 = vadd.xlane.f32.xlu0 %v702
    %v704 = vpop.xlane.xlu0 %703
    %v705 = vsel %vm406, %v697, 0.0
    %706 = vadd.xlane.f32.xlu0 %v705
    %v707 = vpop.xlane.xlu0 %706
    %v708 = vsel %vm406, %v699, 0.0
    %709 = vadd.xlane.f32.xlu0 %v708
    %v710 = vpop.xlane.xlu0 %709
    %v711 = vsel %vm406, %v701, 0.0
    %712 = vadd.xlane.f32.xlu0 %v711
    %v713 = vpop.xlane.xlu0 %712
    %v714 = vrcp.pop %v704
    %v715 = vmul.f32 %v695, %v714
    %v716 = vrcp.pop %v707
    %v717 = vmul.f32 %v697, %v716
    %v718 = vrcp.pop %v710
    %v719 = vmul.f32 %v699, %v718
    %v720 = vrcp.pop %v713
    %v721 = vmul.f32 %v701, %v720
    %722 = vrot.lane.b32.xlu0 %v278, 32
    %v723 = vpop.permute.xlu0 %722
    %724 = vrot.lane.b32.xlu0 %v282, 32
    %v725 = vpop.permute.xlu0 %724
    %v729 = vsel %vm406, %v715, 0
    %v732 = vsel %vm406, %v717, 0
    %v735 = vsel %vm406, %v719, 0
    %v738 = vsel %vm406, %v721, 0
    %740 = vmatprep.subr.mxu0 0.0
    %741 = vmatpush1.msra.mxu0 %v723
    %742 = vmatprep.subr.mxu0 0.0
    %743 = vmatpush1.msra.mxu0 %v725
    %744 = vmatprep.subr.mxu0 0.0
    %745 = vmatpush1.msra.mxu0 0.0
    %746 = vmatprep.subr.mxu0 0.0
    %747 = vmatpush1.msra.mxu0 0.0
    %748 = vmatprep.subr.mxu0 0.0
    %749 = vmatpush1.msra.mxu0 0.0
    %750 = vmatprep.subr.mxu0 0.0
    %751 = vmatpush1.msra.mxu0 0.0
    %752 = vmatprep.subr.mxu0 0.0
    %753 = vmatpush1.msra.mxu0 0.0
    %754 = vmatprep.subr.mxu0 0.0
    %755 = vmatpush1.msra.mxu0 0.0
    %756 = vmatprep.subr.mxu0 0.0
    %757 = vmatpush1.msra.mxu0 0.0
    %758 = vmatprep.subr.mxu0 0.0
    %759 = vmatpush1.msra.mxu0 0.0
    %760 = vmatprep.subr.mxu0 0.0
    %761 = vmatpush1.msra.mxu0 0.0
    %762 = vmatprep.subr.mxu0 0.0
    %763 = vmatpush1.msra.mxu0 0.0
    %764 = vmatprep.subr.mxu0 0.0
    %765 = vmatpush1.msra.mxu0 0.0
    %766 = vmatprep.subr.mxu0 0.0
    %767 = vmatpush1.msra.mxu0 0.0
    %768 = vmatprep.subr.mxu0 0.0
    %769 = vmatpush1.msra.mxu0 0.0
    %770 = vmatprep.subr.mxu0 0.0
    %771 = vmatpush1.msra.mxu0 0.0
    %772 = vmatprep.subr.mxu0 0.0
    %773 = vmatpush1.msra.mxu0 0.0
    %774 = vmatprep.subr.mxu0 0.0
    %775 = vmatpush1.msra.mxu0 0.0
    %776 = vmatprep.subr.mxu0 0.0
    %777 = vmatpush1.msra.mxu0 0.0
    %778 = vmatprep.subr.mxu0 0.0
    %779 = vmatpush1.msra.mxu0 0.0
    %780 = vmatprep.subr.mxu0 0.0
    %781 = vmatpush1.msra.mxu0 0.0
    %782 = vmatprep.subr.mxu0 0.0
    %783 = vmatpush1.msra.mxu0 0.0
    %784 = vmatprep.subr.mxu0 0.0
    %785 = vmatpush1.msra.mxu0 0.0
    %786 = vmatprep.subr.mxu0 0.0
    %787 = vmatpush1.msra.mxu0 0.0
    %788 = vmatprep.subr.mxu0 0.0
    %789 = vmatpush1.msra.mxu0 0.0
    %790 = vmatprep.subr.mxu0 0.0
    %791 = vmatpush1.msra.mxu0 0.0
    %792 = vmatprep.subr.mxu0 0.0
    %793 = vmatpush1.msra.mxu0 0.0
    %794 = vmatprep.subr.mxu0 0.0
    %795 = vmatpush1.msra.mxu0 0.0
    %796 = vmatprep.subr.mxu0 0.0
    %797 = vmatpush1.msra.mxu0 0.0
    %798 = vmatprep.subr.mxu0 0.0
    %799 = vmatpush1.msra.mxu0 0.0
    %800 = vmatprep.subr.mxu0 0.0
    %801 = vmatpush1.msra.mxu0 0.0
    %802 = vmatprep.subr.mxu0 0.0
    %803 = vmatpush1.msra.mxu0 0.0
    %804 = vmatprep.mubr.f32.mxu0 0.0
    %805 = vmatmul.mubr.f32.gmra.mrb[0].mxu0 %v729
    %v806 = vpop.f32.mrb[0].mxu0
    %v807 = vadd.f32 0.0, %v806
    %v808 = vpop.f32.mrb[0].mxu0
    %809 = vmatprep.mubr.f32.mxu0 0.0
    %810 = vmatmul.mubr.f32.gmra.mrb[0].mxu0 %v732
    %v811 = vpop.f32.mrb[0].mxu0
    %v812 = vadd.f32 0.0, %v811
    %v813 = vpop.f32.mrb[0].mxu0
    %814 = vmatprep.mubr.f32.mxu0 0.0
    %815 = vmatmul.mubr.f32.gmra.mrb[0].mxu0 %v735
    %v816 = vpop.f32.mrb[0].mxu0
    %v817 = vadd.f32 0.0, %v816
    %v818 = vpop.f32.mrb[0].mxu0
    %819 = vmatprep.mubr.f32.mxu0 0.0
    %820 = vmatmul.mubr.f32.gmra.mrb[0].mxu0 %v738
    %v821 = vpop.f32.mrb[0].mxu0
    %v822 = vadd.f32 0.0, %v821
    %v823 = vpop.f32.mrb[0].mxu0
    %824 = vdwg.mxu0
    %827 = vrot.lane.b32.xlu0 %v807, 64
    %v828 = vpop.permute.xlu0 %827
    %829 = vrot.lane.b32.xlu0 %v812, 64
    %v830 = vpop.permute.xlu0 %829
    %vm833 = vcmask 785920
    %834 = vst.msk [vmem:[#allocation4] sm:$0xff] %vm833, %v828
    %835 = vst.msk [vmem:[#allocation4 + $0x8] sm:$0xff] %vm833, %v830
    %838 = vrot.lane.b32.xlu0 %v817, 96
    %v839 = vpop.permute.xlu0 %838
    %840 = vrot.lane.b32.xlu0 %v822, 96
    %v841 = vpop.permute.xlu0 %840
    %vm844 = vcmask 1048320
    %845 = vst.msk [vmem:[#allocation4] sm:$0xff] %vm844, %v839
    %846 = vst.msk [vmem:[#allocation4 + $0x8] sm:$0xff] %vm844, %v841
    %849 = vrot.lane.b32.xlu0 %v286, 96
    %v850 = vpop.permute.xlu0 %849
    %851 = vrot.lane.b32.xlu0 %v290, 96
    %v852 = vpop.permute.xlu0 %851
    %853 = vrot.lane.b32.xlu0 %v286, 64
    %v854 = vpop.permute.xlu0 %853
    %855 = vrot.lane.b32.xlu0 %v290, 64
    %v856 = vpop.permute.xlu0 %855
    %v857 = vsel %vm304, %v286, 0
    %v859 = vsel %vm304, %v290, 0
    %v861 = vsel %vm304, %v850, 0
    %v863 = vsel %vm304, %v852, 0
    %v865 = vsel %vm304, %v854, 0
    %v867 = vsel %vm304, %v856, 0
    %869 = vmatprep.subr.mxu0 0.0
    %870 = vmatpush1.xpose.msra.mxu0 %v865
    %871 = vmatprep.subr.mxu0 0.0
    %872 = vmatpush1.xpose.msra.mxu0 %v867
    %873 = vmatprep.subr.mxu0 0.0
    %874 = vmatpush1.xpose.msra.mxu0 0.0
    %875 = vmatprep.subr.mxu0 0.0
    %876 = vmatpush1.xpose.msra.mxu0 0.0
    %877 = vmatprep.subr.mxu0 0.0
    %878 = vmatpush1.xpose.msra.mxu0 0.0
    %879 = vmatprep.subr.mxu0 0.0
    %880 = vmatpush1.xpose.msra.mxu0 0.0
    %881 = vmatprep.subr.mxu0 0.0
    %882 = vmatpush1.xpose.msra.mxu0 0.0
    %883 = vmatprep.subr.mxu0 0.0
    %884 = vmatpush1.xpose.msra.mxu0 0.0
    %885 = vmatprep.subr.mxu0 0.0
    %886 = vmatpush1.xpose.msra.mxu0 0.0
    %887 = vmatprep.subr.mxu0 0.0
    %888 = vmatpush1.xpose.msra.mxu0 0.0
    %889 = vmatprep.subr.mxu0 0.0
    %890 = vmatpush1.xpose.msra.mxu0 0.0
    %891 = vmatprep.subr.mxu0 0.0
    %892 = vmatpush1.xpose.msra.mxu0 0.0
    %893 = vmatprep.subr.mxu0 0.0
    %894 = vmatpush1.xpose.msra.mxu0 0.0
    %895 = vmatprep.subr.mxu0 0.0
    %896 = vmatpush1.xpose.msra.mxu0 0.0
    %897 = vmatprep.subr.mxu0 0.0
    %898 = vmatpush1.xpose.msra.mxu0 0.0
    %899 = vmatprep.subr.mxu0 0.0
    %900 = vmatpush1.xpose.msra.mxu0 0.0
    %901 = vmatprep.subr.mxu0 0.0
    %902 = vmatpush1.xpose.msra.mxu0 0.0
    %903 = vmatprep.subr.mxu0 0.0
    %904 = vmatpush1.xpose.msra.mxu0 0.0
    %905 = vmatprep.subr.mxu0 0.0
    %906 = vmatpush1.xpose.msra.mxu0 0.0
    %907 = vmatprep.subr.mxu0 0.0
    %908 = vmatpush1.xpose.msra.mxu0 0.0
    %909 = vmatprep.subr.mxu0 0.0
    %910 = vmatpush1.xpose.msra.mxu0 0.0
    %911 = vmatprep.subr.mxu0 0.0
    %912 = vmatpush1.xpose.msra.mxu0 0.0
    %913 = vmatprep.subr.mxu0 0.0
    %914 = vmatpush1.xpose.msra.mxu0 0.0
    %915 = vmatprep.subr.mxu0 0.0
    %916 = vmatpush1.xpose.msra.mxu0 0.0
    %917 = vmatprep.subr.mxu0 0.0
    %918 = vmatpush1.xpose.msra.mxu0 0.0
    %919 = vmatprep.subr.mxu0 0.0
    %920 = vmatpush1.xpose.msra.mxu0 0.0
    %921 = vmatprep.subr.mxu0 0.0
    %922 = vmatpush1.xpose.msra.mxu0 0.0
    %923 = vmatprep.subr.mxu0 0.0
    %924 = vmatpush1.xpose.msra.mxu0 0.0
    %925 = vmatprep.subr.mxu0 0.0
    %926 = vmatpush1.xpose.msra.mxu0 0.0
    %927 = vmatprep.subr.mxu0 0.0
    %928 = vmatpush1.xpose.msra.mxu0 0.0
    %929 = vmatprep.subr.mxu0 0.0
    %930 = vmatpush1.xpose.msra.mxu0 0.0
    %931 = vmatprep.subr.mxu0 0.0
    %932 = vmatpush1.xpose.msra.mxu0 0.0
    %933 = vmatprep.mubr.f32.mxu0 0.0
    %934 = vmatmul.mubr.f32.gmra.mrb[0].mxu0 %v857
    %v935 = vpop.f32.mrb[0].mxu0
    %v936 = vadd.f32 0.0, %v935
    %v937 = vpop.f32.mrb[0].mxu0
    %938 = vmatprep.mubr.f32.mxu0 0.0
    %939 = vmatmul.mubr.f32.gmra.mrb[0].mxu0 %v859
    %v940 = vpop.f32.mrb[0].mxu0
    %v941 = vadd.f32 0.0, %v940
    %v942 = vpop.f32.mrb[0].mxu0
    %943 = vmatprep.mubr.f32.mxu0 0.0
    %944 = vmatmul.mubr.f32.gmra.mrb[0].mxu0 %v861
    %v945 = vpop.f32.mrb[0].mxu0
    %v946 = vadd.f32 0.0, %v945
    %v947 = vpop.f32.mrb[0].mxu0
    %948 = vmatprep.mubr.f32.mxu0 0.0
    %949 = vmatmul.mubr.f32.gmra.mrb[0].mxu0 %v863
    %v950 = vpop.f32.mrb[0].mxu0
    %v951 = vadd.f32 0.0, %v950
    %v952 = vpop.f32.mrb[0].mxu0
    %953 = vdwg.mxu0
    %v954 = vmul.f32 %v936, 0.17677669
    %v955 = vmul.f32 %v941, 0.17677669
    %v956 = vmul.f32 %v946, 0.17677669
    %v957 = vmul.f32 %v951, 0.17677669
    %v958 = vsel %vm406, %v954, -inf
    %959 = vmax.xlane.f32.xlu0 %v958
    %v960 = vpop.xlane.xlu0 %959
    %v961 = vsel %vm406, %v955, -inf
    %962 = vmax.xlane.f32.xlu0 %v961
    %v963 = vpop.xlane.xlu0 %962
    %v964 = vsel %vm406, %v956, -inf
    %965 = vmax.xlane.f32.xlu0 %v964
    %v966 = vpop.xlane.xlu0 %965
    %v967 = vsel %vm406, %v957, -inf
    %968 = vmax.xlane.f32.xlu0 %v967
    %v969 = vpop.xlane.xlu0 %968
    %v970 = vsub.f32 %v954, %v960
    %v971 = vsub.f32 %v955, %v963
    %v972 = vsub.f32 %v956, %v966
    %v973 = vsub.f32 %v957, %v969
    %v974 = vmul.f32 %v970, 1.442695
    %v975 = vpow.pop %v974
    %v976 = vmul.f32 %v971, 1.442695
    %v977 = vpow.pop %v976
    %v978 = vmul.f32 %v972, 1.442695
    %v979 = vpow.pop %v978
    %v980 = vmul.f32 %v973, 1.442695
    %v981 = vpow.pop %v980
    %v982 = vsel %vm406, %v975, 0.0
    %983 = vadd.xlane.f32.xlu0 %v982
    %v984 = vpop.xlane.xlu0 %983
    %v985 = vsel %vm406, %v977, 0.0
    %986 = vadd.xlane.f32.xlu0 %v985
    %v987 = vpop.xlane.xlu0 %986
    %v988 = vsel %vm406, %v979, 0.0
    %989 = vadd.xlane.f32.xlu0 %v988
    %v990 = vpop.xlane.xlu0 %989
    %v991 = vsel %vm406, %v981, 0.0
    %992 = vadd.xlane.f32.xlu0 %v991
    %v993 = vpop.xlane.xlu0 %992
    %v994 = vrcp.pop %v984
    %v995 = vmul.f32 %v975, %v994
    %v996 = vrcp.pop %v987
    %v997 = vmul.f32 %v977, %v996
    %v998 = vrcp.pop %v990
    %v999 = vmul.f32 %v979, %v998
    %v1000 = vrcp.pop %v993
    %v1001 = vmul.f32 %v981, %v1000
    %1002 = vrot.lane.b32.xlu0 %v286, 32
    %v1003 = vpop.permute.xlu0 %1002
    %1004 = vrot.lane.b32.xlu0 %v290, 32
    %v1005 = vpop.permute.xlu0 %1004
    %v1009 = vsel %vm406, %v995, 0
    %v1012 = vsel %vm406, %v997, 0
    %v1015 = vsel %vm406, %v999, 0
    %v1018 = vsel %vm406, %v1001, 0
    %1020 = vmatprep.subr.mxu0 0.0
    %1021 = vmatpush1.msra.mxu0 %v1003
    %1022 = vmatprep.subr.mxu0 0.0
    %1023 = vmatpush1.msra.mxu0 %v1005
    %1024 = vmatprep.subr.mxu0 0.0
    %1025 = vmatpush1.msra.mxu0 0.0
    %1026 = vmatprep.subr.mxu0 0.0
    %1027 = vmatpush1.msra.mxu0 0.0
    %1028 = vmatprep.subr.mxu0 0.0
    %1029 = vmatpush1.msra.mxu0 0.0
    %1030 = vmatprep.subr.mxu0 0.0
    %1031 = vmatpush1.msra.mxu0 0.0
    %1032 = vmatprep.subr.mxu0 0.0
    %1033 = vmatpush1.msra.mxu0 0.0
    %1034 = vmatprep.subr.mxu0 0.0
    %1035 = vmatpush1.msra.mxu0 0.0
    %1036 = vmatprep.subr.mxu0 0.0
    %1037 = vmatpush1.msra.mxu0 0.0
    %1038 = vmatprep.subr.mxu0 0.0
    %1039 = vmatpush1.msra.mxu0 0.0
    %1040 = vmatprep.subr.mxu0 0.0
    %1041 = vmatpush1.msra.mxu0 0.0
    %1042 = vmatprep.subr.mxu0 0.0
    %1043 = vmatpush1.msra.mxu0 0.0
    %1044 = vmatprep.subr.mxu0 0.0
    %1045 = vmatpush1.msra.mxu0 0.0
    %1046 = vmatprep.subr.mxu0 0.0
    %1047 = vmatpush1.msra.mxu0 0.0
    %1048 = vmatprep.subr.mxu0 0.0
    %1049 = vmatpush1.msra.mxu0 0.0
    %1050 = vmatprep.subr.mxu0 0.0
    %1051 = vmatpush1.msra.mxu0 0.0
    %1052 = vmatprep.subr.mxu0 0.0
    %1053 = vmatpush1.msra.mxu0 0.0
    %1054 = vmatprep.subr.mxu0 0.0
    %1055 = vmatpush1.msra.mxu0 0.0
    %1056 = vmatprep.subr.mxu0 0.0
    %1057 = vmatpush1.msra.mxu0 0.0
    %1058 = vmatprep.subr.mxu0 0.0
    %1059 = vmatpush1.msra.mxu0 0.0
    %1060 = vmatprep.subr.mxu0 0.0
    %1061 = vmatpush1.msra.mxu0 0.0
    %1062 = vmatprep.subr.mxu0 0.0
    %1063 = vmatpush1.msra.mxu0 0.0
    %1064 = vmatprep.subr.mxu0 0.0
    %1065 = vmatpush1.msra.mxu0 0.0
    %1066 = vmatprep.subr.mxu0 0.0
    %1067 = vmatpush1.msra.mxu0 0.0
    %1068 = vmatprep.subr.mxu0 0.0
    %1069 = vmatpush1.msra.mxu0 0.0
    %1070 = vmatprep.subr.mxu0 0.0
    %1071 = vmatpush1.msra.mxu0 0.0
    %1072 = vmatprep.subr.mxu0 0.0
    %1073 = vmatpush1.msra.mxu0 0.0
    %1074 = vmatprep.subr.mxu0 0.0
    %1075 = vmatpush1.msra.mxu0 0.0
    %1076 = vmatprep.subr.mxu0 0.0
    %1077 = vmatpush1.msra.mxu0 0.0
    %1078 = vmatprep.subr.mxu0 0.0
    %1079 = vmatpush1.msra.mxu0 0.0
    %1080 = vmatprep.subr.mxu0 0.0
    %1081 = vmatpush1.msra.mxu0 0.0
    %1082 = vmatprep.subr.mxu0 0.0
    %1083 = vmatpush1.msra.mxu0 0.0
    %1084 = vmatprep.mubr.f32.mxu0 0.0
    %1085 = vmatmul.mubr.f32.gmra.mrb[0].mxu0 %v1009
    %v1086 = vpop.f32.mrb[0].mxu0
    %v1087 = vadd.f32 0.0, %v1086
    %v1088 = vpop.f32.mrb[0].mxu0
    %1089 = vmatprep.mubr.f32.mxu0 0.0
    %1090 = vmatmul.mubr.f32.gmra.mrb[0].mxu0 %v1012
    %v1091 = vpop.f32.mrb[0].mxu0
    %v1092 = vadd.f32 0.0, %v1091
    %v1093 = vpop.f32.mrb[0].mxu0
    %1094 = vmatprep.mubr.f32.mxu0 0.0
    %1095 = vmatmul.mubr.f32.gmra.mrb[0].mxu0 %v1015
    %v1096 = vpop.f32.mrb[0].mxu0
    %v1097 = vadd.f32 0.0, %v1096
    %v1098 = vpop.f32.mrb[0].mxu0
    %1099 = vmatprep.mubr.f32.mxu0 0.0
    %1100 = vmatmul.mubr.f32.gmra.mrb[0].mxu0 %v1018
    %v1101 = vpop.f32.mrb[0].mxu0
    %v1102 = vadd.f32 0.0, %v1101
    %v1103 = vpop.f32.mrb[0].mxu0
    %1104 = vdwg.mxu0
    %1105 = vst.msk [vmem:[#allocation4 + $0x10] sm:$0xff] %vm304, %v1087
    %1106 = vst.msk [vmem:[#allocation4 + $0x18] sm:$0xff] %vm304, %v1092
    %1109 = vrot.lane.b32.xlu0 %v1097, 32
    %v1110 = vpop.permute.xlu0 %1109
    %1111 = vrot.lane.b32.xlu0 %v1102, 32
    %v1112 = vpop.permute.xlu0 %1111
    %1115 = vst.msk [vmem:[#allocation4 + $0x10] sm:$0xff] %vm564, %v1110
    %1116 = vst.msk [vmem:[#allocation4 + $0x18] sm:$0xff] %vm564, %v1112
    %1119 = vrot.lane.b32.xlu0 %v288, 96
    %v1120 = vpop.permute.xlu0 %1119
    %1121 = vrot.lane.b32.xlu0 %v292, 96
    %v1122 = vpop.permute.xlu0 %1121
    %1123 = vrot.lane.b32.xlu0 %v288, 64
    %v1124 = vpop.permute.xlu0 %1123
    %1125 = vrot.lane.b32.xlu0 %v292, 64
    %v1126 = vpop.permute.xlu0 %1125
    %v1127 = vsel %vm304, %v288, 0
    %v1129 = vsel %vm304, %v292, 0
    %v1131 = vsel %vm304, %v1120, 0
    %v1133 = vsel %vm304, %v1122, 0
    %v1135 = vsel %vm304, %v1124, 0
    %v1137 = vsel %vm304, %v1126, 0
    %1139 = vmatprep.subr.mxu0 0.0
    %1140 = vmatpush1.xpose.msra.mxu0 %v1135
    %1141 = vmatprep.subr.mxu0 0.0
    %1142 = vmatpush1.xpose.msra.mxu0 %v1137
    %1143 = vmatprep.subr.mxu0 0.0
    %1144 = vmatpush1.xpose.msra.mxu0 0.0
    %1145 = vmatprep.subr.mxu0 0.0
    %1146 = vmatpush1.xpose.msra.mxu0 0.0
    %1147 = vmatprep.subr.mxu0 0.0
    %1148 = vmatpush1.xpose.msra.mxu0 0.0
    %1149 = vmatprep.subr.mxu0 0.0
    %1150 = vmatpush1.xpose.msra.mxu0 0.0
    %1151 = vmatprep.subr.mxu0 0.0
    %1152 = vmatpush1.xpose.msra.mxu0 0.0
    %1153 = vmatprep.subr.mxu0 0.0
    %1154 = vmatpush1.xpose.msra.mxu0 0.0
    %1155 = vmatprep.subr.mxu0 0.0
    %1156 = vmatpush1.xpose.msra.mxu0 0.0
    %1157 = vmatprep.subr.mxu0 0.0
    %1158 = vmatpush1.xpose.msra.mxu0 0.0
    %1159 = vmatprep.subr.mxu0 0.0
    %1160 = vmatpush1.xpose.msra.mxu0 0.0
    %1161 = vmatprep.subr.mxu0 0.0
    %1162 = vmatpush1.xpose.msra.mxu0 0.0
    %1163 = vmatprep.subr.mxu0 0.0
    %1164 = vmatpush1.xpose.msra.mxu0 0.0
    %1165 = vmatprep.subr.mxu0 0.0
    %1166 = vmatpush1.xpose.msra.mxu0 0.0
    %1167 = vmatprep.subr.mxu0 0.0
    %1168 = vmatpush1.xpose.msra.mxu0 0.0
    %1169 = vmatprep.subr.mxu0 0.0
    %1170 = vmatpush1.xpose.msra.mxu0 0.0
    %1171 = vmatprep.subr.mxu0 0.0
    %1172 = vmatpush1.xpose.msra.mxu0 0.0
    %1173 = vmatprep.subr.mxu0 0.0
    %1174 = vmatpush1.xpose.msra.mxu0 0.0
    %1175 = vmatprep.subr.mxu0 0.0
    %1176 = vmatpush1.xpose.msra.mxu0 0.0
    %1177 = vmatprep.subr.mxu0 0.0
    %1178 = vmatpush1.xpose.msra.mxu0 0.0
    %1179 = vmatprep.subr.mxu0 0.0
    %1180 = vmatpush1.xpose.msra.mxu0 0.0
    %1181 = vmatprep.subr.mxu0 0.0
    %1182 = vmatpush1.xpose.msra.mxu0 0.0
    %1183 = vmatprep.subr.mxu0 0.0
    %1184 = vmatpush1.xpose.msra.mxu0 0.0
    %1185 = vmatprep.subr.mxu0 0.0
    %1186 = vmatpush1.xpose.msra.mxu0 0.0
    %1187 = vmatprep.subr.mxu0 0.0
    %1188 = vmatpush1.xpose.msra.mxu0 0.0
    %1189 = vmatprep.subr.mxu0 0.0
    %1190 = vmatpush1.xpose.msra.mxu0 0.0
    %1191 = vmatprep.subr.mxu0 0.0
    %1192 = vmatpush1.xpose.msra.mxu0 0.0
    %1193 = vmatprep.subr.mxu0 0.0
    %1194 = vmatpush1.xpose.msra.mxu0 0.0
    %1195 = vmatprep.subr.mxu0 0.0
    %1196 = vmatpush1.xpose.msra.mxu0 0.0
    %1197 = vmatprep.subr.mxu0 0.0
    %1198 = vmatpush1.xpose.msra.mxu0 0.0
    %1199 = vmatprep.subr.mxu0 0.0
    %1200 = vmatpush1.xpose.msra.mxu0 0.0
    %1201 = vmatprep.subr.mxu0 0.0
    %1202 = vmatpush1.xpose.msra.mxu0 0.0
    %1203 = vmatprep.mubr.f32.mxu0 0.0
    %1204 = vmatmul.mubr.f32.gmra.mrb[0].mxu0 %v1127
    %v1205 = vpop.f32.mrb[0].mxu0
    %v1206 = vadd.f32 0.0, %v1205
    %v1207 = vpop.f32.mrb[0].mxu0
    %1208 = vmatprep.mubr.f32.mxu0 0.0
    %1209 = vmatmul.mubr.f32.gmra.mrb[0].mxu0 %v1129
    %v1210 = vpop.f32.mrb[0].mxu0
    %v1211 = vadd.f32 0.0, %v1210
    %v1212 = vpop.f32.mrb[0].mxu0
    %1213 = vmatprep.mubr.f32.mxu0 0.0
    %1214 = vmatmul.mubr.f32.gmra.mrb[0].mxu0 %v1131
    %v1215 = vpop.f32.mrb[0].mxu0
    %v1216 = vadd.f32 0.0, %v1215
    %v1217 = vpop.f32.mrb[0].mxu0
    %1218 = vmatprep.mubr.f32.mxu0 0.0
    %1219 = vmatmul.mubr.f32.gmra.mrb[0].mxu0 %v1133
    %v1220 = vpop.f32.mrb[0].mxu0
    %v1221 = vadd.f32 0.0, %v1220
    %v1222 = vpop.f32.mrb[0].mxu0
    %1223 = vdwg.mxu0
    %v1224 = vmul.f32 %v1206, 0.17677669
    %v1225 = vmul.f32 %v1211, 0.17677669
    %v1226 = vmul.f32 %v1216, 0.17677669
    %v1227 = vmul.f32 %v1221, 0.17677669
    %v1228 = vsel %vm406, %v1224, -inf
    %1229 = vmax.xlane.f32.xlu0 %v1228
    %v1230 = vpop.xlane.xlu0 %1229
    %v1231 = vsel %vm406, %v1225, -inf
    %1232 = vmax.xlane.f32.xlu0 %v1231
    %v1233 = vpop.xlane.xlu0 %1232
    %v1234 = vsel %vm406, %v1226, -inf
    %1235 = vmax.xlane.f32.xlu0 %v1234
    %v1236 = vpop.xlane.xlu0 %1235
    %v1237 = vsel %vm406, %v1227, -inf
    %1238 = vmax.xlane.f32.xlu0 %v1237
    %v1239 = vpop.xlane.xlu0 %1238
    %v1240 = vsub.f32 %v1224, %v1230
    %v1241 = vsub.f32 %v1225, %v1233
    %v1242 = vsub.f32 %v1226, %v1236
    %v1243 = vsub.f32 %v1227, %v1239
    %v1244 = vmul.f32 %v1240, 1.442695
    %v1245 = vpow.pop %v1244
    %v1246 = vmul.f32 %v1241, 1.442695
    %v1247 = vpow.pop %v1246
    %v1248 = vmul.f32 %v1242, 1.442695
    %v1249 = vpow.pop %v1248
    %v1250 = vmul.f32 %v1243, 1.442695
    %v1251 = vpow.pop %v1250
    %v1252 = vsel %vm406, %v1245, 0.0
    %1253 = vadd.xlane.f32.xlu0 %v1252
    %v1254 = vpop.xlane.xlu0 %1253
    %v1255 = vsel %vm406, %v1247, 0.0
    %1256 = vadd.xlane.f32.xlu0 %v1255
    %v1257 = vpop.xlane.xlu0 %1256
    %v1258 = vsel %vm406, %v1249, 0.0
    %1259 = vadd.xlane.f32.xlu0 %v1258
    %v1260 = vpop.xlane.xlu0 %1259
    %v1261 = vsel %vm406, %v1251, 0.0
    %1262 = vadd.xlane.f32.xlu0 %v1261
    %v1263 = vpop.xlane.xlu0 %1262
    %v1264 = vrcp.pop %v1254
    %v1265 = vmul.f32 %v1245, %v1264
    %v1266 = vrcp.pop %v1257
    %v1267 = vmul.f32 %v1247, %v1266
    %v1268 = vrcp.pop %v1260
    %v1269 = vmul.f32 %v1249, %v1268
    %v1270 = vrcp.pop %v1263
    %v1271 = vmul.f32 %v1251, %v1270
    %1272 = vrot.lane.b32.xlu0 %v288, 32
    %v1273 = vpop.permute.xlu0 %1272
    %1274 = vrot.lane.b32.xlu0 %v292, 32
    %v1275 = vpop.permute.xlu0 %1274
    %v1279 = vsel %vm406, %v1265, 0
    %v1282 = vsel %vm406, %v1267, 0
    %v1285 = vsel %vm406, %v1269, 0
    %v1288 = vsel %vm406, %v1271, 0
    %1290 = vmatprep.subr.mxu0 0.0
    %1291 = vmatpush1.msra.mxu0 %v1273
    %1292 = vmatprep.subr.mxu0 0.0
    %1293 = vmatpush1.msra.mxu0 %v1275
    %1294 = vmatprep.subr.mxu0 0.0
    %1295 = vmatpush1.msra.mxu0 0.0
    %1296 = vmatprep.subr.mxu0 0.0
    %1297 = vmatpush1.msra.mxu0 0.0
    %1298 = vmatprep.subr.mxu0 0.0
    %1299 = vmatpush1.msra.mxu0 0.0
    %1300 = vmatprep.subr.mxu0 0.0
    %1301 = vmatpush1.msra.mxu0 0.0
    %1302 = vmatprep.subr.mxu0 0.0
    %1303 = vmatpush1.msra.mxu0 0.0
    %1304 = vmatprep.subr.mxu0 0.0
    %1305 = vmatpush1.msra.mxu0 0.0
    %1306 = vmatprep.subr.mxu0 0.0
    %1307 = vmatpush1.msra.mxu0 0.0
    %1308 = vmatprep.subr.mxu0 0.0
    %1309 = vmatpush1.msra.mxu0 0.0
    %1310 = vmatprep.subr.mxu0 0.0
    %1311 = vmatpush1.msra.mxu0 0.0
    %1312 = vmatprep.subr.mxu0 0.0
    %1313 = vmatpush1.msra.mxu0 0.0
    %1314 = vmatprep.subr.mxu0 0.0
    %1315 = vmatpush1.msra.mxu0 0.0
    %1316 = vmatprep.subr.mxu0 0.0
    %1317 = vmatpush1.msra.mxu0 0.0
    %1318 = vmatprep.subr.mxu0 0.0
    %1319 = vmatpush1.msra.mxu0 0.0
    %1320 = vmatprep.subr.mxu0 0.0
    %1321 = vmatpush1.msra.mxu0 0.0
    %1322 = vmatprep.subr.mxu0 0.0
    %1323 = vmatpush1.msra.mxu0 0.0
    %1324 = vmatprep.subr.mxu0 0.0
    %1325 = vmatpush1.msra.mxu0 0.0
    %1326 = vmatprep.subr.mxu0 0.0
    %1327 = vmatpush1.msra.mxu0 0.0
    %1328 = vmatprep.subr.mxu0 0.0
    %1329 = vmatpush1.msra.mxu0 0.0
    %1330 = vmatprep.subr.mxu0 0.0
    %1331 = vmatpush1.msra.mxu0 0.0
    %1332 = vmatprep.subr.mxu0 0.0
    %1333 = vmatpush1.msra.mxu0 0.0
    %1334 = vmatprep.subr.mxu0 0.0
    %1335 = vmatpush1.msra.mxu0 0.0
    %1336 = vmatprep.subr.mxu0 0.0
    %1337 = vmatpush1.msra.mxu0 0.0
    %1338 = vmatprep.subr.mxu0 0.0
    %1339 = vmatpush1.msra.mxu0 0.0
    %1340 = vmatprep.subr.mxu0 0.0
    %1341 = vmatpush1.msra.mxu0 0.0
    %1342 = vmatprep.subr.mxu0 0.0
    %1343 = vmatpush1.msra.mxu0 0.0
    %1344 = vmatprep.subr.mxu0 0.0
    %1345 = vmatpush1.msra.mxu0 0.0
    %1346 = vmatprep.subr.mxu0 0.0
    %1347 = vmatpush1.msra.mxu0 0.0
    %1348 = vmatprep.subr.mxu0 0.0
    %1349 = vmatpush1.msra.mxu0 0.0
    %1350 = vmatprep.subr.mxu0 0.0
    %1351 = vmatpush1.msra.mxu0 0.0
    %1352 = vmatprep.subr.mxu0 0.0
    %1353 = vmatpush1.msra.mxu0 0.0
    %1354 = vmatprep.mubr.f32.mxu0 0.0
    %1355 = vmatmul.mubr.f32.gmra.mrb[0].mxu0 %v1279
    %v1356 = vpop.f32.mrb[0].mxu0
    %v1357 = vadd.f32 0.0, %v1356
    %v1358 = vpop.f32.mrb[0].mxu0
    %1359 = vmatprep.mubr.f32.mxu0 0.0
    %1360 = vmatmul.mubr.f32.gmra.mrb[0].mxu0 %v1282
    %v1361 = vpop.f32.mrb[0].mxu0
    %v1362 = vadd.f32 0.0, %v1361
    %v1363 = vpop.f32.mrb[0].mxu0
    %1364 = vmatprep.mubr.f32.mxu0 0.0
    %1365 = vmatmul.mubr.f32.gmra.mrb[0].mxu0 %v1285
    %v1366 = vpop.f32.mrb[0].mxu0
    %v1367 = vadd.f32 0.0, %v1366
    %v1368 = vpop.f32.mrb[0].mxu0
    %1369 = vmatprep.mubr.f32.mxu0 0.0
    %1370 = vmatmul.mubr.f32.gmra.mrb[0].mxu0 %v1288
    %v1371 = vpop.f32.mrb[0].mxu0
    %v1372 = vadd.f32 0.0, %v1371
    %v1373 = vpop.f32.mrb[0].mxu0
    %1374 = vdwg.mxu0
    %1377 = vrot.lane.b32.xlu0 %v1357, 64
    %v1378 = vpop.permute.xlu0 %1377
    %1379 = vrot.lane.b32.xlu0 %v1362, 64
    %v1380 = vpop.permute.xlu0 %1379
    %1383 = vst.msk [vmem:[#allocation4 + $0x10] sm:$0xff] %vm833, %v1378
    %1384 = vst.msk [vmem:[#allocation4 + $0x18] sm:$0xff] %vm833, %v1380
    %1387 = vrot.lane.b32.xlu0 %v1367, 96
    %v1388 = vpop.permute.xlu0 %1387
    %1389 = vrot.lane.b32.xlu0 %v1372, 96
    %v1390 = vpop.permute.xlu0 %1389
    %1393 = vst.msk [vmem:[#allocation4 + $0x10] sm:$0xff] %vm844, %v1388
    %1394 = vst.msk [vmem:[#allocation4 + $0x18] sm:$0xff] %vm844, %v1390
    %v1395 = vld [vmem:[#allocation4] sm:$0xff]
    %v1396 = vld [vmem:[#allocation4 + $0x8] sm:$0xff]
    %v1397 = vld [vmem:[#allocation4 + $0x10] sm:$0xff]
    %v1398 = vld [vmem:[#allocation4 + $0x18] sm:$0xff]
    %v1399 = vpack.c.bf16 %v1396, %v1395
    %v1400 = vpack.c.bf16 %v1398, %v1397
    %v1401 = vld [vmem:[#allocation11] sm:$0xf]
    %v1402 = vld [vmem:[#allocation11 + $0x4] sm:$0xf]
    %v1403 = vld [vmem:[#allocation11 + $0x8] sm:$0xf]
    %v1404 = vld [vmem:[#allocation11 + $0xc] sm:$0xf]
    %v1405 = vld [vmem:[#allocation11 + $0x10] sm:$0xf]
    %v1406 = vld [vmem:[#allocation11 + $0x14] sm:$0xf]
    %v1407 = vld [vmem:[#allocation11 + $0x18] sm:$0xf]
    %v1408 = vld [vmem:[#allocation11 + $0x1c] sm:$0xf]
    %v1409 = vld [vmem:[#allocation11 + $0x20] sm:$0xf]
    %v1410 = vld [vmem:[#allocation11 + $0x24] sm:$0xf]
    %v1411 = vld [vmem:[#allocation11 + $0x28] sm:$0xf]
    %v1412 = vld [vmem:[#allocation11 + $0x2c] sm:$0xf]
    %v1413 = vld [vmem:[#allocation11 + $0x30] sm:$0xf]
    %v1414 = vld [vmem:[#allocation11 + $0x34] sm:$0xf]
    %v1415 = vld [vmem:[#allocation11 + $0x38] sm:$0xf]
    %v1416 = vld [vmem:[#allocation11 + $0x3c] sm:$0xf]
    %v1433 = vunpack.c.l.b16 %v1401
    %v1434 = vunpack.c.l.b16 %v1402
    %v1435 = vunpack.c.l.b16 %v1403
    %v1436 = vunpack.c.l.b16 %v1404
    %v1437 = vunpack.c.l.b16 %v1405
    %v1438 = vunpack.c.l.b16 %v1406
    %v1439 = vunpack.c.l.b16 %v1407
    %v1440 = vunpack.c.l.b16 %v1408
    %v1441 = vunpack.c.l.b16 %v1409
    %v1442 = vunpack.c.l.b16 %v1410
    %v1443 = vunpack.c.l.b16 %v1411
    %v1444 = vunpack.c.l.b16 %v1412
    %v1445 = vunpack.c.l.b16 %v1413
    %v1446 = vunpack.c.l.b16 %v1414
    %v1447 = vunpack.c.l.b16 %v1415
    %v1448 = vunpack.c.l.b16 %v1416
    %v1449 = vpack.c.b16 %v1434, %v1433
    %v1450 = vpack.c.b16 %v1436, %v1435
    %v1451 = vpack.c.b16 %v1438, %v1437
    %v1452 = vpack.c.b16 %v1440, %v1439
    %v1453 = vpack.c.b16 %v1442, %v1441
    %v1454 = vpack.c.b16 %v1444, %v1443
    %v1455 = vpack.c.b16 %v1446, %v1445
    %v1456 = vpack.c.b16 %v1448, %v1447
    %1465 = vmatprep.subr.bf16.mxu0 0
    %1466 = vmatpush1.bf16.msra.mxu0 %v1449
    %1467 = vmatprep.subr.bf16.mxu0 0
    %1468 = vmatpush1.bf16.msra.mxu0 %v1450
    %1469 = vmatprep.subr.bf16.mxu0 0
    %1470 = vmatpush1.bf16.msra.mxu0 %v1451
    %1471 = vmatprep.subr.bf16.mxu0 0
    %1472 = vmatpush1.bf16.msra.mxu0 %v1452
    %1473 = vmatprep.subr.bf16.mxu0 0
    %1474 = vmatpush1.bf16.msra.mxu0 %v1453
    %1475 = vmatprep.subr.bf16.mxu0 0
    %1476 = vmatpush1.bf16.msra.mxu0 %v1454
    %1477 = vmatprep.subr.bf16.mxu0 0
    %1478 = vmatpush1.bf16.msra.mxu0 %v1455
    %1479 = vmatprep.subr.bf16.mxu0 0
    %1480 = vmatpush1.bf16.msra.mxu0 %v1456
    %1481 = vmatprep.subr.bf16.mxu0 0
    %1482 = vmatpush1.bf16.msra.mxu0 0
    %1483 = vmatprep.subr.bf16.mxu0 0
    %1484 = vmatpush1.bf16.msra.mxu0 0
    %1485 = vmatprep.subr.bf16.mxu0 0
    %1486 = vmatpush1.bf16.msra.mxu0 0
    %1487 = vmatprep.subr.bf16.mxu0 0
    %1488 = vmatpush1.bf16.msra.mxu0 0
    %1489 = vmatprep.subr.bf16.mxu0 0
    %1490 = vmatpush1.bf16.msra.mxu0 0
    %1491 = vmatprep.subr.bf16.mxu0 0
    %1492 = vmatpush1.bf16.msra.mxu0 0
    %1493 = vmatprep.subr.bf16.mxu0 0
    %1494 = vmatpush1.bf16.msra.mxu0 0
    %1495 = vmatprep.subr.bf16.mxu0 0
    %1496 = vmatpush1.bf16.msra.mxu0 0
    %1497 = vmatprep.mubr.bf16.mxu0 0
    %1498 = vmatmul.mubr.bf16.gmra.mrb[0].mxu0 %v1399
    %v1499 = vpop.f32.mrb[0].mxu0
    %v1500 = vadd.f32 0.0, %v1499
    %v1501 = vpop.f32.mrb[0].mxu0
    %v1502 = vpop.f32.mrb[0].mxu0
    %v1503 = vadd.f32 0.0, %v1502
    %v1504 = vpop.f32.mrb[0].mxu0
    %1505 = vmatprep.mubr.bf16.mxu0 0
    %1506 = vmatmul.mubr.bf16.gmra.mrb[0].mxu0 %v1400
    %v1507 = vpop.f32.mrb[0].mxu0
    %v1508 = vadd.f32 0.0, %v1507
    %v1509 = vpop.f32.mrb[0].mxu0
    %v1510 = vpop.f32.mrb[0].mxu0
    %v1511 = vadd.f32 0.0, %v1510
    %v1512 = vpop.f32.mrb[0].mxu0
    %1513 = vdwg.mxu0
    %v1514 = vadd.f32 %v109, %v1500
    %v1515 = vadd.f32 %v110, %v1503
    %v1516 = vadd.f32 %v111, %v1508
    %v1517 = vadd.f32 %v112, %v1511
    %v1518 = vmul.f32 %v1514, %v1514
    %v1519 = vmul.f32 %v1515, %v1515
    %v1520 = vmul.f32 %v1516, %v1516
    %v1521 = vmul.f32 %v1517, %v1517
    %1522 = vadd.xlane.f32.xlu0 %v1518
    %v1523 = vpop.xlane.xlu0 %1522
    %1524 = vadd.xlane.f32.xlu0 %v1519
    %v1525 = vpop.xlane.xlu0 %1524
    %1526 = vadd.xlane.f32.xlu0 %v1520
    %v1527 = vpop.xlane.xlu0 %1526
    %1528 = vadd.xlane.f32.xlu0 %v1521
    %v1529 = vpop.xlane.xlu0 %1528
    %v1530 = vmul.f32 %v1523, %v126
    %v1531 = vmul.f32 %v1525, %v126
    %v1532 = vmul.f32 %v1527, %v126
    %v1533 = vmul.f32 %v1529, %v126
    %v1534 = vadd.f32 %v1530, 1e-06
    %v1535 = vadd.f32 %v1531, 1e-06
    %v1536 = vadd.f32 %v1532, 1e-06
    %v1537 = vadd.f32 %v1533, 1e-06
    %v1538 = vrsqrt.pop %v1534
    %v1539 = vrsqrt.pop %v1535
    %v1540 = vrsqrt.pop %v1536
    %v1541 = vrsqrt.pop %v1537
    %v1542 = vmul.f32 %v1514, %v1538
    %v1543 = vmul.f32 %v1515, %v1539
    %v1544 = vmul.f32 %v1516, %v1540
    %v1545 = vmul.f32 %v1517, %v1541
    %v1547 = vlaneseq
    %v1548 = vshrl.u32 %v1547, 7
    %v1549 = vsub.s32 0, %v1548
    %v1550 = vrot.slane %v113, %v1549
    %v1552 = vmul.f32 %v1542, %v1550
    %v1553 = vmul.f32 %v1543, %v1550
    %v1554 = vmul.f32 %v1544, %v1550
    %v1555 = vmul.f32 %v1545, %v1550
    %s1556 = smul.u32 4, 16
    %s1557 = smul.u32 %s1556, 4
    %s1558 = sshll.u32 %s1557, 4
    %1559 = dma.done [#allocation5], %s1558
    %s1560 = smul.u32 4, 32
    %s1561 = smul.u32 %s1560, 1
    %s1562 = sshll.u32 %s1561, 4
    %1563 = dma.done %s97, %s1562
    %v1564 = vpack.c.bf16 %v1553, %v1552
    %v1565 = vpack.c.bf16 %v1555, %v1554
    %v1566 = vld [vmem:[#allocation2] sm:$0xff]
    %v1567 = vld [vmem:[#allocation2 + $0x8] sm:$0xff]
    %v1568 = vld [vmem:[#allocation2 + $0x10] sm:$0xff]
    %v1569 = vld [vmem:[#allocation2 + $0x18] sm:$0xff]
    %v1570 = vld [vmem:[#allocation2 + $0x20] sm:$0xff]
    %v1571 = vld [vmem:[#allocation2 + $0x28] sm:$0xff]
    %v1572 = vld [vmem:[#allocation2 + $0x30] sm:$0xff]
    %v1573 = vld [vmem:[#allocation2 + $0x38] sm:$0xff]
    %v1574 = vld [vmem:[#allocation2 + $0x40] sm:$0xff]
    %v1575 = vld [vmem:[#allocation2 + $0x48] sm:$0xff]
    %v1576 = vld [vmem:[#allocation2 + $0x50] sm:$0xff]
    %v1577 = vld [vmem:[#allocation2 + $0x58] sm:$0xff]
    %v1578 = vld [vmem:[#allocation2 + $0x60] sm:$0xff]
    %v1579 = vld [vmem:[#allocation2 + $0x68] sm:$0xff]
    %v1580 = vld [vmem:[#allocation2 + $0x70] sm:$0xff]
    %v1581 = vld [vmem:[#allocation2 + $0x78] sm:$0xff]
    %v1582 = vld [vmem:[#allocation2 + $0x80] sm:$0xff]
    %v1583 = vld [vmem:[#allocation2 + $0x88] sm:$0xff]
    %v1584 = vld [vmem:[#allocation2 + $0x90] sm:$0xff]
    %v1585 = vld [vmem:[#allocation2 + $0x98] sm:$0xff]
    %v1586 = vld [vmem:[#allocation2 + $0xa0] sm:$0xff]
    %v1587 = vld [vmem:[#allocation2 + $0xa8] sm:$0xff]
    %v1588 = vld [vmem:[#allocation2 + $0xb0] sm:$0xff]
    %v1589 = vld [vmem:[#allocation2 + $0xb8] sm:$0xff]
    %v1590 = vld [vmem:[#allocation2 + $0xc0] sm:$0xff]
    %v1591 = vld [vmem:[#allocation2 + $0xc8] sm:$0xff]
    %v1592 = vld [vmem:[#allocation2 + $0xd0] sm:$0xff]
    %v1593 = vld [vmem:[#allocation2 + $0xd8] sm:$0xff]
    %v1594 = vld [vmem:[#allocation2 + $0xe0] sm:$0xff]
    %v1595 = vld [vmem:[#allocation2 + $0xe8] sm:$0xff]
    %v1596 = vld [vmem:[#allocation2 + $0xf0] sm:$0xff]
    %v1597 = vld [vmem:[#allocation2 + $0xf8] sm:$0xff]
    %1598 = vmatprep.subr.bf16.mxu0 %v1567
    %1599 = vmatpush1.bf16.msra.mxu0 %v1566
    %1600 = vmatprep.subr.bf16.mxu0 %v1571
    %1601 = vmatpush1.bf16.msra.mxu0 %v1570
    %1602 = vmatprep.subr.bf16.mxu0 %v1575
    %1603 = vmatpush1.bf16.msra.mxu0 %v1574
    %1604 = vmatprep.subr.bf16.mxu0 %v1579
    %1605 = vmatpush1.bf16.msra.mxu0 %v1578
    %1606 = vmatprep.subr.bf16.mxu0 %v1583
    %1607 = vmatpush1.bf16.msra.mxu0 %v1582
    %1608 = vmatprep.subr.bf16.mxu0 %v1587
    %1609 = vmatpush1.bf16.msra.mxu0 %v1586
    %1610 = vmatprep.subr.bf16.mxu0 %v1591
    %1611 = vmatpush1.bf16.msra.mxu0 %v1590
    %1612 = vmatprep.subr.bf16.mxu0 %v1595
    %1613 = vmatpush1.bf16.msra.mxu0 %v1594
    %1614 = vmatprep.subr.bf16.mxu0 0
    %1615 = vmatpush1.bf16.msra.mxu0 0
    %1616 = vmatprep.subr.bf16.mxu0 0
    %1617 = vmatpush1.bf16.msra.mxu0 0
    %1618 = vmatprep.subr.bf16.mxu0 0
    %1619 = vmatpush1.bf16.msra.mxu0 0
    %1620 = vmatprep.subr.bf16.mxu0 0
    %1621 = vmatpush1.bf16.msra.mxu0 0
    %1622 = vmatprep.subr.bf16.mxu0 0
    %1623 = vmatpush1.bf16.msra.mxu0 0
    %1624 = vmatprep.subr.bf16.mxu0 0
    %1625 = vmatpush1.bf16.msra.mxu0 0
    %1626 = vmatprep.subr.bf16.mxu0 0
    %1627 = vmatpush1.bf16.msra.mxu0 0
    %1628 = vmatprep.subr.bf16.mxu0 0
    %1629 = vmatpush1.bf16.msra.mxu0 0
    %1630 = vmatprep.mubr.bf16.mxu0 0
    %1631 = vmatmul.mubr.bf16.gmra.mrb[0].mxu0 %v1564
    %v1632 = vpop.f32.mrb[0].mxu0
    %v1633 = vadd.f32 0.0, %v1632
    %v1634 = vpop.f32.mrb[0].mxu0
    %v1635 = vadd.f32 0.0, %v1634
    %v1636 = vpop.f32.mrb[0].mxu0
    %v1637 = vadd.f32 0.0, %v1636
    %v1638 = vpop.f32.mrb[0].mxu0
    %v1639 = vadd.f32 0.0, %v1638
    %1640 = vmatprep.mubr.bf16.mxu0 0
    %1641 = vmatmul.mubr.bf16.gmra.mrb[0].mxu0 %v1565
    %v1642 = vpop.f32.mrb[0].mxu0
    %v1643 = vadd.f32 0.0, %v1642
    %v1644 = vpop.f32.mrb[0].mxu0
    %v1645 = vadd.f32 0.0, %v1644
    %v1646 = vpop.f32.mrb[0].mxu0
    %v1647 = vadd.f32 0.0, %v1646
    %v1648 = vpop.f32.mrb[0].mxu0
    %v1649 = vadd.f32 0.0, %v1648
    %1650 = vdwg.mxu0
    %1651 = vmatprep.subr.bf16.mxu0 %v1569
    %1652 = vmatpush1.bf16.msra.mxu0 %v1568
    %1653 = vmatprep.subr.bf16.mxu0 %v1573
    %1654 = vmatpush1.bf16.msra.mxu0 %v1572
    %1655 = vmatprep.subr.bf16.mxu0 %v1577
    %1656 = vmatpush1.bf16.msra.mxu0 %v1576
    %1657 = vmatprep.subr.bf16.mxu0 %v1581
    %1658 = vmatpush1.bf16.msra.mxu0 %v1580
    %1659 = vmatprep.subr.bf16.mxu0 %v1585
    %1660 = vmatpush1.bf16.msra.mxu0 %v1584
    %1661 = vmatprep.subr.bf16.mxu0 %v1589
    %1662 = vmatpush1.bf16.msra.mxu0 %v1588
    %1663 = vmatprep.subr.bf16.mxu0 %v1593
    %1664 = vmatpush1.bf16.msra.mxu0 %v1592
    %1665 = vmatprep.subr.bf16.mxu0 %v1597
    %1666 = vmatpush1.bf16.msra.mxu0 %v1596
    %1667 = vmatprep.subr.bf16.mxu0 0
    %1668 = vmatpush1.bf16.msra.mxu0 0
    %1669 = vmatprep.subr.bf16.mxu0 0
    %1670 = vmatpush1.bf16.msra.mxu0 0
    %1671 = vmatprep.subr.bf16.mxu0 0
    %1672 = vmatpush1.bf16.msra.mxu0 0
    %1673 = vmatprep.subr.bf16.mxu0 0
    %1674 = vmatpush1.bf16.msra.mxu0 0
    %1675 = vmatprep.subr.bf16.mxu0 0
    %1676 = vmatpush1.bf16.msra.mxu0 0
    %1677 = vmatprep.subr.bf16.mxu0 0
    %1678 = vmatpush1.bf16.msra.mxu0 0
    %1679 = vmatprep.subr.bf16.mxu0 0
    %1680 = vmatpush1.bf16.msra.mxu0 0
    %1681 = vmatprep.subr.bf16.mxu0 0
    %1682 = vmatpush1.bf16.msra.mxu0 0
    %1683 = vmatprep.mubr.bf16.mxu0 0
    %1684 = vmatmul.mubr.bf16.gmra.mrb[0].mxu0 %v1564
    %v1685 = vpop.f32.mrb[0].mxu0
    %v1686 = vadd.f32 0.0, %v1685
    %v1687 = vpop.f32.mrb[0].mxu0
    %v1688 = vadd.f32 0.0, %v1687
    %v1689 = vpop.f32.mrb[0].mxu0
    %v1690 = vadd.f32 0.0, %v1689
    %v1691 = vpop.f32.mrb[0].mxu0
    %v1692 = vadd.f32 0.0, %v1691
    %1693 = vmatprep.mubr.bf16.mxu0 0
    %1694 = vmatmul.mubr.bf16.gmra.mrb[0].mxu0 %v1565
    %v1695 = vpop.f32.mrb[0].mxu0
    %v1696 = vadd.f32 0.0, %v1695
    %v1697 = vpop.f32.mrb[0].mxu0
    %v1698 = vadd.f32 0.0, %v1697
    %v1699 = vpop.f32.mrb[0].mxu0
    %v1700 = vadd.f32 0.0, %v1699
    %v1701 = vpop.f32.mrb[0].mxu0
    %v1702 = vadd.f32 0.0, %v1701
    %1703 = vdwg.mxu0
    %v1704 = vxor.u32 %v1633, 2147483648
    %v1705 = vxor.u32 %v1635, 2147483648
    %v1706 = vxor.u32 %v1637, 2147483648
    %v1707 = vxor.u32 %v1639, 2147483648
    %v1708 = vxor.u32 %v1643, 2147483648
    %v1709 = vxor.u32 %v1645, 2147483648
    %v1710 = vxor.u32 %v1647, 2147483648
    %v1711 = vxor.u32 %v1649, 2147483648
    %v1712 = vmul.f32 %v1704, 1.442695
    %v1713 = vpow.pop %v1712
    %v1714 = vmul.f32 %v1705, 1.442695
    %v1715 = vpow.pop %v1714
    %v1716 = vmul.f32 %v1706, 1.442695
    %v1717 = vpow.pop %v1716
    %v1718 = vmul.f32 %v1707, 1.442695
    %v1719 = vpow.pop %v1718
    %v1720 = vmul.f32 %v1708, 1.442695
    %v1721 = vpow.pop %v1720
    %v1722 = vmul.f32 %v1709, 1.442695
    %v1723 = vpow.pop %v1722
    %v1724 = vmul.f32 %v1710, 1.442695
    %v1725 = vpow.pop %v1724
    %v1726 = vmul.f32 %v1711, 1.442695
    %v1727 = vpow.pop %v1726
    %v1728 = vadd.f32 %v1713, 1.0
    %v1729 = vadd.f32 %v1715, 1.0
    %v1730 = vadd.f32 %v1717, 1.0
    %v1731 = vadd.f32 %v1719, 1.0
    %v1732 = vadd.f32 %v1721, 1.0
    %v1733 = vadd.f32 %v1723, 1.0
    %v1734 = vadd.f32 %v1725, 1.0
    %v1735 = vadd.f32 %v1727, 1.0
    %v1736 = vrcp.pop %v1728
    %v1737 = vmul.f32 1.0, %v1736
    %v1738 = vrcp.pop %v1729
    %v1739 = vmul.f32 1.0, %v1738
    %v1740 = vrcp.pop %v1730
    %v1741 = vmul.f32 1.0, %v1740
    %v1742 = vrcp.pop %v1731
    %v1743 = vmul.f32 1.0, %v1742
    %v1744 = vrcp.pop %v1732
    %v1745 = vmul.f32 1.0, %v1744
    %v1746 = vrcp.pop %v1733
    %v1747 = vmul.f32 1.0, %v1746
    %v1748 = vrcp.pop %v1734
    %v1749 = vmul.f32 1.0, %v1748
    %v1750 = vrcp.pop %v1735
    %v1751 = vmul.f32 1.0, %v1750
    %v1752 = vmul.f32 %v1633, %v1737
    %v1753 = vmul.f32 %v1635, %v1739
    %v1754 = vmul.f32 %v1637, %v1741
    %v1755 = vmul.f32 %v1639, %v1743
    %v1756 = vmul.f32 %v1643, %v1745
    %v1757 = vmul.f32 %v1645, %v1747
    %v1758 = vmul.f32 %v1647, %v1749
    %v1759 = vmul.f32 %v1649, %v1751
    %v1760 = vmul.f32 %v1752, %v1686
    %v1761 = vmul.f32 %v1753, %v1688
    %v1762 = vmul.f32 %v1754, %v1690
    %v1763 = vmul.f32 %v1755, %v1692
    %v1764 = vmul.f32 %v1756, %v1696
    %v1765 = vmul.f32 %v1757, %v1698
    %v1766 = vmul.f32 %v1758, %v1700
    %v1767 = vmul.f32 %v1759, %v1702
    %v1768 = vpack.c.bf16 %v1762, %v1760
    %v1769 = vpack.c.bf16 %v1763, %v1761
    %v1770 = vpack.c.bf16 %v1766, %v1764
    %v1771 = vpack.c.bf16 %v1767, %v1765
    %v1772 = vld [vmem:[#allocation3] sm:$0xff]
    %v1773 = vld [vmem:[#allocation3 + $0x8] sm:$0xff]
    %v1774 = vld [vmem:[#allocation3 + $0x10] sm:$0xff]
    %v1775 = vld [vmem:[#allocation3 + $0x18] sm:$0xff]
    %v1776 = vld [vmem:[#allocation3 + $0x20] sm:$0xff]
    %v1777 = vld [vmem:[#allocation3 + $0x28] sm:$0xff]
    %v1778 = vld [vmem:[#allocation3 + $0x30] sm:$0xff]
    %v1779 = vld [vmem:[#allocation3 + $0x38] sm:$0xff]
    %v1780 = vld [vmem:[#allocation3 + $0x40] sm:$0xff]
    %v1781 = vld [vmem:[#allocation3 + $0x48] sm:$0xff]
    %v1782 = vld [vmem:[#allocation3 + $0x50] sm:$0xff]
    %v1783 = vld [vmem:[#allocation3 + $0x58] sm:$0xff]
    %v1784 = vld [vmem:[#allocation3 + $0x60] sm:$0xff]
    %v1785 = vld [vmem:[#allocation3 + $0x68] sm:$0xff]
    %v1786 = vld [vmem:[#allocation3 + $0x70] sm:$0xff]
    %v1787 = vld [vmem:[#allocation3 + $0x78] sm:$0xff]
    %1788 = vmatprep.subr.bf16.mxu0 0
    %1789 = vmatpush1.bf16.msra.mxu0 %v1772
    %1790 = vmatprep.subr.bf16.mxu0 0
    %1791 = vmatpush1.bf16.msra.mxu0 %v1773
    %1792 = vmatprep.subr.bf16.mxu0 0
    %1793 = vmatpush1.bf16.msra.mxu0 %v1774
    %1794 = vmatprep.subr.bf16.mxu0 0
    %1795 = vmatpush1.bf16.msra.mxu0 %v1775
    %1796 = vmatprep.subr.bf16.mxu0 0
    %1797 = vmatpush1.bf16.msra.mxu0 %v1776
    %1798 = vmatprep.subr.bf16.mxu0 0
    %1799 = vmatpush1.bf16.msra.mxu0 %v1777
    %1800 = vmatprep.subr.bf16.mxu0 0
    %1801 = vmatpush1.bf16.msra.mxu0 %v1778
    %1802 = vmatprep.subr.bf16.mxu0 0
    %1803 = vmatpush1.bf16.msra.mxu0 %v1779
    %1804 = vmatprep.subr.bf16.mxu0 0
    %1805 = vmatpush1.bf16.msra.mxu0 %v1780
    %1806 = vmatprep.subr.bf16.mxu0 0
    %1807 = vmatpush1.bf16.msra.mxu0 %v1781
    %1808 = vmatprep.subr.bf16.mxu0 0
    %1809 = vmatpush1.bf16.msra.mxu0 %v1782
    %1810 = vmatprep.subr.bf16.mxu0 0
    %1811 = vmatpush1.bf16.msra.mxu0 %v1783
    %1812 = vmatprep.subr.bf16.mxu0 0
    %1813 = vmatpush1.bf16.msra.mxu0 %v1784
    %1814 = vmatprep.subr.bf16.mxu0 0
    %1815 = vmatpush1.bf16.msra.mxu0 %v1785
    %1816 = vmatprep.subr.bf16.mxu0 0
    %1817 = vmatpush1.bf16.msra.mxu0 %v1786
    %1818 = vmatprep.subr.bf16.mxu0 0
    %1819 = vmatpush1.bf16.msra.mxu0 %v1787
    %1820 = vmatprep.mubr.bf16.mxu0 %v1769
    %1821 = vmatmul.mubr.bf16.gmra.mrb[0].mxu0 %v1768
    %v1822 = vpop.f32.mrb[0].mxu0
    %v1823 = vadd.f32 0.0, %v1822
    %v1824 = vpop.f32.mrb[0].mxu0
    %v1825 = vpop.f32.mrb[0].mxu0
    %v1826 = vadd.f32 0.0, %v1825
    %v1827 = vpop.f32.mrb[0].mxu0
    %1828 = vmatprep.mubr.bf16.mxu0 %v1771
    %1829 = vmatmul.mubr.bf16.gmra.mrb[0].mxu0 %v1770
    %v1830 = vpop.f32.mrb[0].mxu0
    %v1831 = vadd.f32 0.0, %v1830
    %v1832 = vpop.f32.mrb[0].mxu0
    %v1833 = vpop.f32.mrb[0].mxu0
    %v1834 = vadd.f32 0.0, %v1833
    %v1835 = vpop.f32.mrb[0].mxu0
    %1836 = vdwg.mxu0
    %v1837 = vadd.f32 %v1552, %v1823
    %v1838 = vadd.f32 %v1553, %v1826
    %v1839 = vadd.f32 %v1554, %v1831
    %v1840 = vadd.f32 %v1555, %v1834
    %1841 = vst [vmem:[#allocation12] sm:$0xff] %v1837
    %1842 = vst [vmem:[#allocation12 + $0x8] sm:$0xff] %v1838
    %1843 = vst [vmem:[#allocation12 + $0x10] sm:$0xff] %v1839
    %1844 = vst [vmem:[#allocation12 + $0x18] sm:$0xff] %v1840
    // Predicated region
    $region34: #{tpu_custom_call.1} parent=1 // pred_check
      _
    $region35: #{tpu_custom_call.1} parent=1 // pred_check_branch
      %1846 = sbr.rel (0) target = $region37
    $region36: #{tpu_custom_call.1} parent=1 // pred_region
      %s1848 = ssub.s32 512, 512
      %1849 = vsyncadd [#allocation8], %s1848
      %s1850 = sshll.u32 [#allocation12], 4
      %s1851 = int_to_ptr.vmem [resolvable:$true] %s1850
      %1856 = dma.vmem_to_hbm [thread:$0]  %s1851, 512, %s6, [#allocation8], 128, 128, 8
    $region37: #{tpu_custom_call.1} parent=1 // pred_fallthru
      _
    // Predicated region
    $region38: #{tpu_custom_call.1} parent=1 // pred_check
      _
    $region39: #{tpu_custom_call.1} parent=1 // pred_check_branch
      %1858 = sbr.rel (0) target = $region41
    $region40: #{tpu_custom_call.1} parent=1 // pred_region
      %1859 = dma.done [#allocation8], 512
    $region41: #{tpu_custom_call.1} parent=1 // pred_fallthru
      _
    %1860 = vsyncpa [#allocation7], 1
    %1861 = vsyncpa [#allocation10], 1
    %1862 = vsyncpa [#allocation8], 1
  %1863 = vsyncmov [#allocation5]
  %s1864 = vpop.sfrf %1863
  %p1865 = scmp.eq.s32.totalorder %s1864, 0
  %p1866 = pneg %p1865
  %1868 = shalt.err (%p1866)
  %s1869 = scalar_lea.sflag [#allocation5], 1
  %1870 = vsyncmov %s1869
  %s1871 = vpop.sfrf %1870
  %p1872 = scmp.eq.s32.totalorder %s1871, 0
  %p1873 = pneg %p1872
  %1875 = shalt.err (%p1873)

</llo_original>
